<compile_context>
chip_gen: v5e
topology: v5e:2x2
jax: 0.10.0
libtpu: 0.0.40
codegen_flags: <defaults>
</compile_context>

<pallas_src>
import functools

import numpy as np
import jax
import jax.numpy as jnp
from jax.experimental import pallas as pl
from jax.experimental.pallas import tpu as pltpu


# ---------------------------------------------------------------------------
# Problem constants (fixed by the module: .view(-1, 16, 512), 160x160 resize)
# ---------------------------------------------------------------------------
LATENT_TOKENS, LATENT_DIM = 16, 512
IMG_C = 3
GEN_H = GEN_W = 16                       # stand-in generator output resolution
OUT_H = OUT_W = 160                      # F.interpolate target in the module
POOL = 8                                 # FR stand-in pools 160x160 -> 8x8
EMB_DIM = 256                            # FR stand-in embedding dim
IMG_FLAT = IMG_C * GEN_H * GEN_W         # 768 = flattened NCHW pixels


# ---------------------------------------------------------------------------
# Host-side matrix construction (offline parameter preparation)
# ---------------------------------------------------------------------------
def bilinear_matrix(in_size, out_size):
    """PyTorch F.interpolate(mode='bilinear', align_corners=False) as a matrix."""
    A = np.zeros((out_size, in_size), dtype=np.float32)
    scale = in_size / out_size
    for o in range(out_size):
        src = (o + 0.5) * scale - 0.5
        src = max(src, 0.0)
        i0 = min(int(np.floor(src)), in_size - 1)
        i1 = min(i0 + 1, in_size - 1)
        w1 = src - i0
        A[o, i0] += 1.0 - w1
        A[o, i1] += w1
    return A


def avg_pool_matrix(in_size, out_size):
    k = in_size // out_size
    P = np.zeros((out_size, in_size), dtype=np.float32)
    for r in range(out_size):
        P[r, r * k:(r + 1) * k] = 1.0 / k
    return P


def make_params(key):
    """Deterministic linear stand-ins for the external sub-modules + folded maps."""
    k1, k2, k3 = jax.random.split(key, 3)
    w_inv = np.asarray(jax.random.normal(k1, (LATENT_DIM, LATENT_DIM), jnp.float32)) * 0.02
    w_gen = np.asarray(jax.random.normal(k2, (LATENT_DIM, IMG_FLAT), jnp.float32)) * 0.5
    w_fr = np.asarray(jax.random.normal(k3, (IMG_C * POOL * POOL, EMB_DIM), jnp.float32)) * 0.1

    # Fold inverse_T o generator (both linear stand-ins; the clamp comes after
    # w_gen, so this is exact) into one (512, 768) matrix.
    w_lat2img = w_inv @ w_gen

    # Fold (bilinear 16->160 resize) o (20x20 avg pool) o (FR flatten + linear)
    # into one (768, 256) matrix.  Everything after the clamp is linear on the
    # pixels, so this is mathematically identical to materializing the 160x160
    # images — but ~400x less MXU work and no 160x160 intermediate in HBM.
    a_h = bilinear_matrix(GEN_H, OUT_H)              # (160, 16)
    a_w = bilinear_matrix(GEN_W, OUT_W)              # (160, 16)
    pool = avg_pool_matrix(OUT_H, POOL)              # (8, 160)
    m_row = pool @ a_h                               # (8, 16)
    m_col = pool @ a_w                               # (8, 16)
    w_fr4 = w_fr.reshape(IMG_C, POOL, POOL, EMB_DIM)
    w_img2emb = np.einsum('rh,qw,crqe->chwe', m_row, m_col, w_fr4).reshape(IMG_FLAT, EMB_DIM)

    return dict(
        # bf16 kernel weights stored once (no per-call cast / HBM copy)
        w_lat2img=jnp.asarray(w_lat2img, jnp.bfloat16),
        w_img2emb=jnp.asarray(w_img2emb, jnp.bfloat16),
        # f32 un-folded pieces kept only for the pure-JAX reference check
        w_inv=jnp.asarray(w_inv), w_gen=jnp.asarray(w_gen), w_fr=jnp.asarray(w_fr),
        a_h=jnp.asarray(a_h), a_w=jnp.asarray(a_w), pool=jnp.asarray(pool))


# ---------------------------------------------------------------------------
# The fused Pallas kernel: one grid step == `pairs_per_block` pairs (4*ppb imgs)
# ---------------------------------------------------------------------------
def _fr_metric_kernel(lat_ref, w_img_ref, w_emb_ref, dist_ref, *, pairs_per_block):
    ppb = pairs_per_block

    # inverse_T + generator stand-ins (folded): (Bb, 512) bf16 @ (512, 768) bf16
    img = jnp.dot(lat_ref[...], w_img_ref[...],
                  preferred_element_type=jnp.float32)            # (Bb, 768) f32

    # post-process: (img * 0.5 + 0.5).clamp(0, 1)
    img = jnp.clip(img * 0.5 + 0.5, 0.0, 1.0)

    # bilinear resize 16->160 + avg-pool 160->8 + FR head, folded offline
    emb = jnp.dot(img.astype(jnp.bfloat16), w_emb_ref[...],
                  preferred_element_type=jnp.float32)            # (Bb, 256) f32

    # cosine distances; matches get_distance(): e / (||e||_2 + 1e-6)
    inv_norm = pl.reciprocal(
        jnp.sqrt(jnp.sum(emb * emb, axis=-1, keepdims=True)) + 1e-6, approx=True)
    embn = emb * inv_norm                                        # (Bb, 256)

    # rows are role-grouped per block: [i | j | i_id | j_id], ppb rows each
    e_i = embn[0 * ppb:1 * ppb]
    e_j = embn[1 * ppb:2 * ppb]
    e_iid = embn[2 * ppb:3 * ppb]
    e_jid = embn[3 * ppb:4 * ppb]

    d_ii = 1.0 - jnp.sum(e_i * e_iid, axis=-1, keepdims=True)    # positive (i, i_id)
    d_jj = 1.0 - jnp.sum(e_j * e_jid, axis=-1, keepdims=True)    # positive (j, j_id)
    d_ij = 1.0 - jnp.sum(e_i * e_jid, axis=-1, keepdims=True)    # negative (i, j_id)
    d_ji = 1.0 - jnp.sum(e_j * e_iid, axis=-1, keepdims=True)    # negative (j, i_id)

    dist_ref[0] = jnp.concatenate([d_ii, d_jj, d_ij, d_ji], axis=-1)   # (ppb, 4)


# ---------------------------------------------------------------------------
# Forward pass (mirrors FR_latent_space_distance.forward semantics)
# ---------------------------------------------------------------------------
def select_pairs(identity_ids, num_pairs, seed=10):
    np.random.seed(seed)
    pairs = []
    indices = np.arange(len(identity_ids))
    np.random.shuffle(indices)
    for i in range(0, len(indices) - 1, 2):
        if len(pairs) >= num_pairs:
            break
        if identity_ids[indices[i]] != identity_ids[indices[i + 1]]:
            pairs.append((int(indices[i]), int(indices[i + 1])))
    return pairs


def _choose_pairs_per_block(n_pairs, max_pairs_per_block):
    # Bb = 4*ppb MXU rows per grid step.  Multiple-of-4 ppb keeps Bb a multiple
    # of 16 sublanes (bf16 tiling); default cap 64 -> Bb = 256 matches the
    # v6e/v7x MXU tile (use 32 -> Bb = 128 on v5e).  Aim for >= 2 grid blocks
    # when there are enough pairs so both v7x TensorCores get work.
    ppb = min(max_pairs_per_block, max(1, -(-n_pairs // 2)))
    ppb = -(-ppb // 4) * 4
    return ppb


def fr_latent_space_distance_forward(encoded_images, identity_ids, params,
                                     num_pairs=1000, max_pairs_per_block=64):
    pairs = select_pairs(np.asarray(identity_ids), num_pairs)
    n_pairs = len(pairs)
    if n_pairs == 0:
        raise ValueError("select_pairs produced no valid (different-identity) pairs")

    ppb = _choose_pairs_per_block(n_pairs, max_pairs_per_block)
    num_blocks = int(pl.cdiv(n_pairs, ppb))
    n_pad = num_blocks * ppb
    # pad by repeating the last pair; padded results are dropped before averaging
    pairs_padded = pairs + [pairs[-1]] * (n_pad - n_pairs)
    idx1 = np.array([p[0] for p in pairs_padded])
    idx2 = np.array([p[1] for p in pairs_padded])

    # latent half-and-half mixing (pure slicing/concat glue, as in the module);
    # the flat half (4096 of 8192) is exactly the first 8 of 16 tokens.
    enc = jnp.asarray(encoded_images, jnp.float32).reshape(-1, LATENT_TOKENS, LATENT_DIM)
    w_i, w_j = enc[idx1], enc[idx2]                              # (P, 16, 512)
    half_tok = LATENT_TOKENS // 2
    w_iid = jnp.concatenate([w_i[:, :half_tok], w_j[:, half_tok:]], axis=1)
    w_jid = jnp.concatenate([w_j[:, :half_tok], w_i[:, half_tok:]], axis=1)

    # Generator stand-in consumes only the token mean and inverse_T is linear,
    # so reduce to the token mean on the host and ship bf16: 32x less latent
    # HBM traffic.  NOTE: revert for a real per-token StyleGAN / DisGAN.
    means = jnp.stack([w_i.mean(axis=1), w_j.mean(axis=1),
                       w_iid.mean(axis=1), w_jid.mean(axis=1)], axis=0)   # (4, P, 512)
    lat = means.reshape(4, num_blocks, ppb, LATENT_DIM).transpose(1, 0, 2, 3)
    lat = lat.reshape(num_blocks * 4 * ppb, LATENT_DIM).astype(jnp.bfloat16)

    bb = 4 * ppb
    kernel = functools.partial(_fr_metric_kernel, pairs_per_block=ppb)
    dists = pl.pallas_call(
        kernel,
        out_shape=jax.ShapeDtypeStruct((num_blocks, ppb, 4), jnp.float32),
        grid=(num_blocks,),
        in_specs=[
            pl.BlockSpec((bb, LATENT_DIM), lambda i: (i, 0)),
            pl.BlockSpec((LATENT_DIM, IMG_FLAT), lambda i: (0, 0)),
            pl.BlockSpec((IMG_FLAT, EMB_DIM), lambda i: (0, 0)),
        ],
        out_specs=pl.BlockSpec((1, ppb, 4), lambda i: (i, 0, 0)),
        compiler_params=pltpu.CompilerParams(
            dimension_semantics=("parallel",)),
    )(lat, params["w_lat2img"], params["w_img2emb"])

    d = dists.reshape(n_pad, 4)[:n_pairs]     # [d(i,i_id), d(j,j_id), d(i,j_id), d(j,i_id)]
    avg_pos = jnp.mean(d[:, 0:2])
    avg_neg = jnp.mean(d[:, 2:4])
    ratio = avg_pos / avg_neg
    # TODO(synk): FrechetInceptionDistance (InceptionV3 features + Gaussian
    # statistics) has no clean Pallas equivalent; FID is not computed here.
    return avg_pos, avg_neg, ratio


# ---------------------------------------------------------------------------
# Pure-JAX f32 reference (un-folded path) to validate the in-kernel folding.
# ---------------------------------------------------------------------------
def _reference_forward(encoded_images, identity_ids, params, num_pairs):
    pairs = select_pairs(np.asarray(identity_ids), num_pairs)
    w_inv, w_gen, w_fr = params["w_inv"], params["w_gen"], params["w_fr"]
    a_h, a_w, pool = params["a_h"], params["a_w"], params["pool"]

    def embed(w_flat):
        tok = w_flat.reshape(LATENT_TOKENS, LATENT_DIM)
        feat = tok.mean(axis=0) @ w_inv                          # inverse_T stand-in
        img = (feat @ w_gen).reshape(IMG_C, GEN_H, GEN_W)        # generator stand-in
        img = jnp.clip(img * 0.5 + 0.5, 0.0, 1.0)
        big = jnp.einsum('yh,chw,xw->cyx', a_h, img, a_w)        # bilinear 16 -> 160
        pooled = jnp.einsum('ry,cyx,qx->crq', pool, big, pool)   # 160 -> 8 avg pool
        e = pooled.reshape(-1) @ w_fr                            # FR stand-in
        return e / (jnp.linalg.norm(e) + 1e-6)

    enc = jnp.asarray(encoded_images, jnp.float32)
    pos, neg = [], []
    for i1, i2 in pairs:
        wi = enc[i1].reshape(-1)
        wj = enc[i2].reshape(-1)
        half = wi.shape[0] // 2
        wiid = jnp.concatenate([wi[:half], wj[half:]])
        wjid = jnp.concatenate([wj[:half], wi[half:]])
        e_i, e_j, e_iid, e_jid = embed(wi), embed(wj), embed(wiid), embed(wjid)
        pos += [1.0 - e_i @ e_iid, 1.0 - e_j @ e_jid]
        neg += [1.0 - e_i @ e_jid, 1.0 - e_j @ e_iid]
    ap = jnp.mean(jnp.stack(pos))
    an = jnp.mean(jnp.stack(neg))
    return ap, an, ap / an


# ---------------------------------------------------------------------------
if __name__ == "__main__":
    key = jax.random.PRNGKey(0)
    k_imgs, k_params = jax.random.split(key)

    n_images = 8
    encoded_images = jax.random.normal(
        k_imgs, (n_images, LATENT_TOKENS, LATENT_DIM), jnp.float32)
    identity_ids = np.arange(n_images, dtype=np.int32)          # all distinct IDs
    params = make_params(k_params)

    avg_pos, avg_neg, ratio = fr_latent_space_distance_forward(
        encoded_images, identity_ids, params, num_pairs=2)
    jax.block_until_ready((avg_pos, avg_neg, ratio))

    ref_pos, ref_neg, ref_ratio = _reference_forward(
        encoded_images, identity_ids, params, num_pairs=2)
    np.testing.assert_allclose(float(avg_pos), float(ref_pos), rtol=5e-2, atol=5e-2)
    np.testing.assert_allclose(float(avg_neg), float(ref_neg), rtol=5e-2, atol=5e-2)
    np.testing.assert_allclose(float(ratio), float(ref_ratio), rtol=5e-2, atol=5e-2)
    assert np.isfinite(float(avg_pos)) and np.isfinite(float(avg_neg)) \
        and np.isfinite(float(ratio))
    print("KERNEL_OK")
</pallas_src>

<mosaic_0001>
module attributes {stable_mosaic.version = 11 : i64} {
  func.func @_fr_metric_kernel(%arg0: i32, %arg1: memref<16x512xbf16, #tpu.memory_space<vmem>>, %arg2: memref<512x768xbf16, #tpu.memory_space<vmem>>, %arg3: memref<768x256xbf16, #tpu.memory_space<vmem>>, %arg4: memref<1x4x4xf32, #tpu.memory_space<vmem>>) attributes {dimension_semantics = [#tpu.dimension_semantics<parallel>], iteration_bounds = array<i64: 1>, scalar_prefetch = 0 : i64, scratch_operands = 0 : i64, tpu.core_type = #tpu.core_type<tc>, window_params = [{transform_indices = @transform_0, window_bounds = array<i64: 16, 512>}, {pipeline_mode = #tpu.pipeline_mode<synchronous>, transform_indices = @transform_1, window_bounds = array<i64: 512, 768>}, {pipeline_mode = #tpu.pipeline_mode<synchronous>, transform_indices = @transform_2, window_bounds = array<i64: 768, 256>}, {transform_indices = @transform_3, window_bounds = array<i64: 1, 4, 4>}]} {
    %c0 = arith.constant 0 : index
    %c0_0 = arith.constant 0 : index
    %0 = vector.load %arg1[%c0, %c0_0] : memref<16x512xbf16, #tpu.memory_space<vmem>>, vector<16x512xbf16>
    %c0_1 = arith.constant 0 : index
    %c0_2 = arith.constant 0 : index
    %1 = vector.load %arg2[%c0_1, %c0_2] : memref<512x768xbf16, #tpu.memory_space<vmem>>, vector<512x768xbf16>
    %cst = arith.constant dense<0.000000e+00> : vector<16x768xf32>
    %2 = tpu.matmul %0, %1, %cst {dimension_numbers = #tpu.dot_dimension_numbers<[1], [0], [0], [1], [0, 0, 1, 1], [], []>} : vector<16x512xbf16>, vector<512x768xbf16>, vector<16x768xf32> -> vector<16x768xf32>
    %cst_3 = arith.constant 5.000000e-01 : f32
    %3 = vector.broadcast %cst_3 : f32 to vector<16x768xf32>
    %4 = arith.mulf %2, %3 : vector<16x768xf32>
    %cst_4 = arith.constant 5.000000e-01 : f32
    %5 = vector.broadcast %cst_4 : f32 to vector<16x768xf32>
    %6 = arith.addf %4, %5 : vector<16x768xf32>
    %cst_5 = arith.constant 0.000000e+00 : f32
    %cst_6 = arith.constant 1.000000e+00 : f32
    %7 = vector.broadcast %cst_5 : f32 to vector<16x768xf32>
    %8 = arith.maximumf %7, %6 : vector<16x768xf32>
    %9 = vector.broadcast %cst_6 : f32 to vector<16x768xf32>
    %10 = arith.minimumf %9, %8 : vector<16x768xf32>
    %11 = arith.truncf %10 : vector<16x768xf32> to vector<16x768xbf16>
    %c0_7 = arith.constant 0 : index
    %c0_8 = arith.constant 0 : index
    %12 = vector.load %arg3[%c0_7, %c0_8] : memref<768x256xbf16, #tpu.memory_space<vmem>>, vector<768x256xbf16>
    %cst_9 = arith.constant dense<0.000000e+00> : vector<16x256xf32>
    %13 = tpu.matmul %11, %12, %cst_9 {dimension_numbers = #tpu.dot_dimension_numbers<[1], [0], [0], [1], [0, 0, 1, 1], [], []>} : vector<16x768xbf16>, vector<768x256xbf16>, vector<16x256xf32> -> vector<16x256xf32>
    %14 = arith.mulf %13, %13 : vector<16x256xf32>
    %cst_10 = arith.constant dense<0.000000e+00> : vector<16xf32>
    %15 = vector.multi_reduction <add>, %14, %cst_10 [1] : vector<16x256xf32> to vector<16xf32>
    %16 = vector.shape_cast %15 : vector<16xf32> to vector<16x1xf32>
    %17 = math.sqrt %16 : vector<16x1xf32>
    %cst_11 = arith.constant 9.99999997E-7 : f32
    %18 = vector.broadcast %cst_11 : f32 to vector<16x1xf32>
    %19 = arith.addf %17, %18 : vector<16x1xf32>
    %20 = tpu.reciprocal %19 {approx = true} : vector<16x1xf32> -> vector<16x1xf32>
    %21 = vector.broadcast %20 : vector<16x1xf32> to vector<16x256xf32>
    %22 = arith.mulf %13, %21 : vector<16x256xf32>
    %23 = vector.extract_strided_slice %22 {offsets = [0, 0], sizes = [4, 256], strides = [1, 1]} : vector<16x256xf32> to vector<4x256xf32>
    %24 = vector.extract_strided_slice %22 {offsets = [4, 0], sizes = [4, 256], strides = [1, 1]} : vector<16x256xf32> to vector<4x256xf32>
    %25 = vector.extract_strided_slice %22 {offsets = [8, 0], sizes = [4, 256], strides = [1, 1]} : vector<16x256xf32> to vector<4x256xf32>
    %26 = vector.extract_strided_slice %22 {offsets = [12, 0], sizes = [4, 256], strides = [1, 1]} : vector<16x256xf32> to vector<4x256xf32>
    %27 = arith.mulf %23, %25 : vector<4x256xf32>
    %cst_12 = arith.constant dense<0.000000e+00> : vector<4xf32>
    %28 = vector.multi_reduction <add>, %27, %cst_12 [1] : vector<4x256xf32> to vector<4xf32>
    %29 = vector.shape_cast %28 : vector<4xf32> to vector<4x1xf32>
    %cst_13 = arith.constant 1.000000e+00 : f32
    %30 = vector.broadcast %cst_13 : f32 to vector<4x1xf32>
    %31 = arith.subf %30, %29 : vector<4x1xf32>
    %32 = arith.mulf %24, %26 : vector<4x256xf32>
    %cst_14 = arith.constant dense<0.000000e+00> : vector<4xf32>
    %33 = vector.multi_reduction <add>, %32, %cst_14 [1] : vector<4x256xf32> to vector<4xf32>
    %34 = vector.shape_cast %33 : vector<4xf32> to vector<4x1xf32>
    %cst_15 = arith.constant 1.000000e+00 : f32
    %35 = vector.broadcast %cst_15 : f32 to vector<4x1xf32>
    %36 = arith.subf %35, %34 : vector<4x1xf32>
    %37 = arith.mulf %23, %26 : vector<4x256xf32>
    %cst_16 = arith.constant dense<0.000000e+00> : vector<4xf32>
    %38 = vector.multi_reduction <add>, %37, %cst_16 [1] : vector<4x256xf32> to vector<4xf32>
    %39 = vector.shape_cast %38 : vector<4xf32> to vector<4x1xf32>
    %cst_17 = arith.constant 1.000000e+00 : f32
    %40 = vector.broadcast %cst_17 : f32 to vector<4x1xf32>
    %41 = arith.subf %40, %39 : vector<4x1xf32>
    %42 = arith.mulf %24, %25 : vector<4x256xf32>
    %cst_18 = arith.constant dense<0.000000e+00> : vector<4xf32>
    %43 = vector.multi_reduction <add>, %42, %cst_18 [1] : vector<4x256xf32> to vector<4xf32>
    %44 = vector.shape_cast %43 : vector<4xf32> to vector<4x1xf32>
    %cst_19 = arith.constant 1.000000e+00 : f32
    %45 = vector.broadcast %cst_19 : f32 to vector<4x1xf32>
    %46 = arith.subf %45, %44 : vector<4x1xf32>
    %47 = tpu.concatenate %31, %36, %41, %46 in 1 : vector<4x1xf32>, vector<4x1xf32>, vector<4x1xf32>, vector<4x1xf32> -> vector<4x4xf32>
    %c0_20 = arith.constant 0 : index
    %c0_21 = arith.constant 0 : index
    %c0_22 = arith.constant 0 : index
    %48 = vector.load %arg4[%c0_20, %c0_21, %c0_22] : memref<1x4x4xf32, #tpu.memory_space<vmem>>, vector<1x4x4xf32>
    %49 = vector.shape_cast %48 : vector<1x4x4xf32> to vector<4x4xf32>
    %50 = vector.shape_cast %47 : vector<4x4xf32> to vector<1x4x4xf32>
    tpu.vector_store %arg4[%c0_20, %c0_21, %c0_22], %50 {strides = array<i32>} : memref<1x4x4xf32, #tpu.memory_space<vmem>>, vector<1x4x4xf32>,
    return
  }
  func.func @transform_0(%arg0: i32) -> (i32, i32) {
    %c0_i32 = arith.constant 0 : i32
    %c0_i32_0 = arith.constant 0 : i32
    return %arg0, %c0_i32 : i32, i32
  }
  func.func @transform_1(%arg0: i32) -> (i32, i32) {
    %c0_i32 = arith.constant 0 : i32
    %c0_i32_0 = arith.constant 0 : i32
    %c0_i32_1 = arith.constant 0 : i32
    return %c0_i32, %c0_i32_0 : i32, i32
  }
  func.func @transform_2(%arg0: i32) -> (i32, i32) {
    %c0_i32 = arith.constant 0 : i32
    %c0_i32_0 = arith.constant 0 : i32
    %c0_i32_1 = arith.constant 0 : i32
    return %c0_i32, %c0_i32_0 : i32, i32
  }
  func.func @transform_3(%arg0: i32) -> (i32, i32, i32) {
    %c0_i32 = arith.constant 0 : i32
    %c0_i32_0 = arith.constant 0 : i32
    %c0_i32_1 = arith.constant 0 : i32
    return %arg0, %c0_i32, %c0_i32_0 : i32, i32, i32
  }
}

</mosaic_0001>

<llo_original>
// kernel: tpu_custom_call.1
$region0: #{tpu_custom_call.1}
  #allocation0 [shape = 'u32[]', space=smem, size = 0x4, offset = 0x4, fixed_abs, tag = 'smem constant byte address 0x4 - core index']
  #allocation1 [shape = 'u32[72,128]{1,0:T(1,128)}', space=vmem, size = 0x9000, scoped, tag = 'internal scratch']
  %s0 = inlined_call_operand.hbm [shape: bf16[16,512], index: 0, kind: input, shape index: {}]
  %s1 = inlined_call_operand.hbm [shape: bf16[512,768], index: 1, kind: input, shape index: {}]
  %s2 = inlined_call_operand.hbm [shape: bf16[768,256], index: 2, kind: input, shape index: {}]
  %s3 = inlined_call_operand.hbm [shape: f32[1,4,4], index: 3, kind: output, shape index: {}]
  %s4 = sld [smem:[#allocation0]]
  $region34: #{tpu_custom_call.1} parent=0
    _
  %s6 = ssub.s32 1, %s4
  %s7 = scalar_select 0, %s6, %s4
  $region1: #{tpu_custom_call.1} parent=0
    #allocation2 [shape = 'u8[16384]{0}', space=vmem, size = 0x4000, scoped, tag = 'input window, operand 0, single buffered']
    #allocation3 [shape = 's32[1]{0}', space=sflag, size = 0x4, scoped, tag = 'scoped memory for tpu_custom_call.1']
    #allocation4 [shape = 's32[1]{0}', space=sflag, size = 0x4, scoped, tag = 'scoped memory for tpu_custom_call.1']
    #allocation5 [shape = 'u8[786432]{0}', space=vmem, size = 0xc0000, scoped, tag = 'input window, operand 1, single buffered']
    #allocation6 [shape = 's32[1]{0}', space=sflag, size = 0x4, scoped, tag = 'scoped memory for tpu_custom_call.1']
    #allocation7 [shape = 'u8[393216]{0}', space=vmem, size = 0x60000, scoped, tag = 'input window, operand 2, single buffered']
    #allocation8 [shape = 'u8[2048]{0}', space=vmem, size = 0x800, scoped, tag = 'output window, operand 0, single buffered']
    %8 = vsyncpa [#allocation3], 0
    %9 = vsyncpa [#allocation6], 0
    %10 = vsyncpa [#allocation4], 0
    // Predicated region
    $region2: #{tpu_custom_call.1} parent=1 // pred_check
      _
    $region3: #{tpu_custom_call.1} parent=1 // pred_check_branch
      %12 = sbr.rel (0) target = $region5
    $region4: #{tpu_custom_call.1} parent=1 // pred_region
      %14 = vsyncadd [#allocation3], 0
      %s15 = sshll.u32 %s0, 4
      %s16 = int_to_ptr.hbm [resolvable:$true] %s15
      %s17 = sshll.u32 [#allocation2], 4
      %s18 = int_to_ptr.vmem [resolvable:$true] %s17
      %23 = dma.hbm_to_vmem [thread:$0]  %s16, 512, %s18, [#allocation3], 256, 256, 16
    $region5: #{tpu_custom_call.1} parent=1 // pred_fallthru
      _
    // Predicated region
    $region6: #{tpu_custom_call.1} parent=1 // pred_check
      _
    $region7: #{tpu_custom_call.1} parent=1 // pred_check_branch
      %25 = sbr.rel (0) target = $region9
    $region8: #{tpu_custom_call.1} parent=1 // pred_region
      %27 = vsyncadd [#allocation6], 0
      %s28 = sshll.u32 %s1, 4
      %s29 = int_to_ptr.hbm [resolvable:$true] %s28
      %s30 = sshll.u32 [#allocation5], 4
      %s31 = int_to_ptr.vmem [resolvable:$true] %s30
      %36 = dma.hbm_to_vmem [thread:$0]  %s29, 24576, %s31, [#allocation6], 384, 384, 24
    $region9: #{tpu_custom_call.1} parent=1 // pred_fallthru
      _
    // Predicated region
    $region10: #{tpu_custom_call.1} parent=1 // pred_check
      _
    $region11: #{tpu_custom_call.1} parent=1 // pred_check_branch
      %38 = sbr.rel (0) target = $region13
    $region12: #{tpu_custom_call.1} parent=1 // pred_region
      %40 = vsyncadd [#allocation6], 0
      %s41 = sshll.u32 %s2, 4
      %s42 = int_to_ptr.hbm [resolvable:$true] %s41
      %s43 = sshll.u32 [#allocation7], 4
      %s44 = int_to_ptr.vmem [resolvable:$true] %s43
      %49 = dma.hbm_to_vmem [thread:$0]  %s42, 12288, %s44, [#allocation6], 128, 128, 8
    $region13: #{tpu_custom_call.1} parent=1 // pred_fallthru
      _
    // Predicated region
    $region14: #{tpu_custom_call.1} parent=1 // pred_check
      _
    $region15: #{tpu_custom_call.1} parent=1 // pred_check_branch
      %51 = sbr.rel (0) target = $region17
    $region16: #{tpu_custom_call.1} parent=1 // pred_region
      %53 = dma.done [#allocation3], 512
    $region17: #{tpu_custom_call.1} parent=1 // pred_fallthru
      _
    // Predicated region
    $region18: #{tpu_custom_call.1} parent=1 // pred_check
      _
    $region19: #{tpu_custom_call.1} parent=1 // pred_check_branch
      %55 = sbr.rel (0) target = $region21
    $region20: #{tpu_custom_call.1} parent=1 // pred_region
      %57 = dma.done [#allocation6], 24576
    $region21: #{tpu_custom_call.1} parent=1 // pred_fallthru
      _
    // Predicated region
    $region22: #{tpu_custom_call.1} parent=1 // pred_check
      _
    $region23: #{tpu_custom_call.1} parent=1 // pred_check_branch
      %59 = sbr.rel (0) target = $region25
    $region24: #{tpu_custom_call.1} parent=1 // pred_region
      %61 = dma.done [#allocation6], 12288
    $region25: #{tpu_custom_call.1} parent=1 // pred_fallthru
      _
    %v62 = vld [vmem:[#allocation2] sm:$0xff]
    %v63 = vld [vmem:[#allocation2 + $0x8] sm:$0xff]
    %v64 = vld [vmem:[#allocation2 + $0x10] sm:$0xff]
    %v65 = vld [vmem:[#allocation2 + $0x18] sm:$0xff]
    %v66 = vld [vmem:[#allocation5] sm:$0xff]
    %v67 = vld [vmem:[#allocation5 + $0x8] sm:$0xff]
    %v68 = vld [vmem:[#allocation5 + $0x10] sm:$0xff]
    %v69 = vld [vmem:[#allocation5 + $0x18] sm:$0xff]
    %v70 = vld [vmem:[#allocation5 + $0x20] sm:$0xff]
    %v71 = vld [vmem:[#allocation5 + $0x28] sm:$0xff]
    %v72 = vld [vmem:[#allocation5 + $0x30] sm:$0xff]
    %v73 = vld [vmem:[#allocation5 + $0x38] sm:$0xff]
    %v74 = vld [vmem:[#allocation5 + $0x40] sm:$0xff]
    %v75 = vld [vmem:[#allocation5 + $0x48] sm:$0xff]
    %v76 = vld [vmem:[#allocation5 + $0x50] sm:$0xff]
    %v77 = vld [vmem:[#allocation5 + $0x58] sm:$0xff]
    %v78 = vld [vmem:[#allocation5 + $0x60] sm:$0xff]
    %v79 = vld [vmem:[#allocation5 + $0x68] sm:$0xff]
    %v80 = vld [vmem:[#allocation5 + $0x70] sm:$0xff]
    %v81 = vld [vmem:[#allocation5 + $0x78] sm:$0xff]
    %v82 = vld [vmem:[#allocation5 + $0x80] sm:$0xff]
    %v83 = vld [vmem:[#allocation5 + $0x88] sm:$0xff]
    %v84 = vld [vmem:[#allocation5 + $0x90] sm:$0xff]
    %v85 = vld [vmem:[#allocation5 + $0x98] sm:$0xff]
    %v86 = vld [vmem:[#allocation5 + $0xa0] sm:$0xff]
    %v87 = vld [vmem:[#allocation5 + $0xa8] sm:$0xff]
    %v88 = vld [vmem:[#allocation5 + $0xb0] sm:$0xff]
    %v89 = vld [vmem:[#allocation5 + $0xb8] sm:$0xff]
    %v90 = vld [vmem:[#allocation5 + $0xc0] sm:$0xff]
    %v91 = vld [vmem:[#allocation5 + $0xc8] sm:$0xff]
    %v92 = vld [vmem:[#allocation5 + $0xd0] sm:$0xff]
    %v93 = vld [vmem:[#allocation5 + $0xd8] sm:$0xff]
    %v94 = vld [vmem:[#allocation5 + $0xe0] sm:$0xff]
    %v95 = vld [vmem:[#allocation5 + $0xe8] sm:$0xff]
    %v96 = vld [vmem:[#allocation5 + $0xf0] sm:$0xff]
    %v97 = vld [vmem:[#allocation5 + $0xf8] sm:$0xff]
    %v98 = vld [vmem:[#allocation5 + $0x100] sm:$0xff]
    %v99 = vld [vmem:[#allocation5 + $0x108] sm:$0xff]
    %v100 = vld [vmem:[#allocation5 + $0x110] sm:$0xff]
    %v101 = vld [vmem:[#allocation5 + $0x118] sm:$0xff]
    %v102 = vld [vmem:[#allocation5 + $0x120] sm:$0xff]
    %v103 = vld [vmem:[#allocation5 + $0x128] sm:$0xff]
    %v104 = vld [vmem:[#allocation5 + $0x130] sm:$0xff]
    %v105 = vld [vmem:[#allocation5 + $0x138] sm:$0xff]
    %v106 = vld [vmem:[#allocation5 + $0x140] sm:$0xff]
    %v107 = vld [vmem:[#allocation5 + $0x148] sm:$0xff]
    %v108 = vld [vmem:[#allocation5 + $0x150] sm:$0xff]
    %v109 = vld [vmem:[#allocation5 + $0x158] sm:$0xff]
    %v110 = vld [vmem:[#allocation5 + $0x160] sm:$0xff]
    %v111 = vld [vmem:[#allocation5 + $0x168] sm:$0xff]
    %v112 = vld [vmem:[#allocation5 + $0x170] sm:$0xff]
    %v113 = vld [vmem:[#allocation5 + $0x178] sm:$0xff]
    %v114 = vld [vmem:[#allocation5 + $0x180] sm:$0xff]
    %v115 = vld [vmem:[#allocation5 + $0x188] sm:$0xff]
    %v116 = vld [vmem:[#allocation5 + $0x190] sm:$0xff]
    %v117 = vld [vmem:[#allocation5 + $0x198] sm:$0xff]
    %v118 = vld [vmem:[#allocation5 + $0x1a0] sm:$0xff]
    %v119 = vld [vmem:[#allocation5 + $0x1a8] sm:$0xff]
    %v120 = vld [vmem:[#allocation5 + $0x1b0] sm:$0xff]
    %v121 = vld [vmem:[#allocation5 + $0x1b8] sm:$0xff]
    %v122 = vld [vmem:[#allocation5 + $0x1c0] sm:$0xff]
    %v123 = vld [vmem:[#allocation5 + $0x1c8] sm:$0xff]
    %v124 = vld [vmem:[#allocation5 + $0x1d0] sm:$0xff]
    %v125 = vld [vmem:[#allocation5 + $0x1d8] sm:$0xff]
    %v126 = vld [vmem:[#allocation5 + $0x1e0] sm:$0xff]
    %v127 = vld [vmem:[#allocation5 + $0x1e8] sm:$0xff]
    %v128 = vld [vmem:[#allocation5 + $0x1f0] sm:$0xff]
    %v129 = vld [vmem:[#allocation5 + $0x1f8] sm:$0xff]
    %v130 = vld [vmem:[#allocation5 + $0x200] sm:$0xff]
    %v131 = vld [vmem:[#allocation5 + $0x208] sm:$0xff]
    %v132 = vld [vmem:[#allocation5 + $0x210] sm:$0xff]
    %v133 = vld [vmem:[#allocation5 + $0x218] sm:$0xff]
    %v134 = vld [vmem:[#allocation5 + $0x220] sm:$0xff]
    %v135 = vld [vmem:[#allocation5 + $0x228] sm:$0xff]
    %v136 = vld [vmem:[#allocation5 + $0x230] sm:$0xff]
    %v137 = vld [vmem:[#allocation5 + $0x238] sm:$0xff]
    %v138 = vld [vmem:[#allocation5 + $0x240] sm:$0xff]
    %v139 = vld [vmem:[#allocation5 + $0x248] sm:$0xff]
    %v140 = vld [vmem:[#allocation5 + $0x250] sm:$0xff]
    %v141 = vld [vmem:[#allocation5 + $0x258] sm:$0xff]
    %v142 = vld [vmem:[#allocation5 + $0x260] sm:$0xff]
    %v143 = vld [vmem:[#allocation5 + $0x268] sm:$0xff]
    %v144 = vld [vmem:[#allocation5 + $0x270] sm:$0xff]
    %v145 = vld [vmem:[#allocation5 + $0x278] sm:$0xff]
    %v146 = vld [vmem:[#allocation5 + $0x280] sm:$0xff]
    %v147 = vld [vmem:[#allocation5 + $0x288] sm:$0xff]
    %v148 = vld [vmem:[#allocation5 + $0x290] sm:$0xff]
    %v149 = vld [vmem:[#allocation5 + $0x298] sm:$0xff]
    %v150 = vld [vmem:[#allocation5 + $0x2a0] sm:$0xff]
    %v151 = vld [vmem:[#allocation5 + $0x2a8] sm:$0xff]
    %v152 = vld [vmem:[#allocation5 + $0x2b0] sm:$0xff]
    %v153 = vld [vmem:[#allocation5 + $0x2b8] sm:$0xff]
    %v154 = vld [vmem:[#allocation5 + $0x2c0] sm:$0xff]
    %v155 = vld [vmem:[#allocation5 + $0x2c8] sm:$0xff]
    %v156 = vld [vmem:[#allocation5 + $0x2d0] sm:$0xff]
    %v157 = vld [vmem:[#allocation5 + $0x2d8] sm:$0xff]
    %v158 = vld [vmem:[#allocation5 + $0x2e0] sm:$0xff]
    %v159 = vld [vmem:[#allocation5 + $0x2e8] sm:$0xff]
    %v160 = vld [vmem:[#allocation5 + $0x2f0] sm:$0xff]
    %v161 = vld [vmem:[#allocation5 + $0x2f8] sm:$0xff]
    %v162 = vld [vmem:[#allocation5 + $0x300] sm:$0xff]
    %v163 = vld [vmem:[#allocation5 + $0x308] sm:$0xff]
    %v164 = vld [vmem:[#allocation5 + $0x310] sm:$0xff]
    %v165 = vld [vmem:[#allocation5 + $0x318] sm:$0xff]
    %v166 = vld [vmem:[#allocation5 + $0x320] sm:$0xff]
    %v167 = vld [vmem:[#allocation5 + $0x328] sm:$0xff]
    %v168 = vld [vmem:[#allocation5 + $0x330] sm:$0xff]
    %v169 = vld [vmem:[#allocation5 + $0x338] sm:$0xff]
    %v170 = vld [vmem:[#allocation5 + $0x340] sm:$0xff]
    %v171 = vld [vmem:[#allocation5 + $0x348] sm:$0xff]
    %v172 = vld [vmem:[#allocation5 + $0x350] sm:$0xff]
    %v173 = vld [vmem:[#allocation5 + $0x358] sm:$0xff]
    %v174 = vld [vmem:[#allocation5 + $0x360] sm:$0xff]
    %v175 = vld [vmem:[#allocation5 + $0x368] sm:$0xff]
    %v176 = vld [vmem:[#allocation5 + $0x370] sm:$0xff]
    %v177 = vld [vmem:[#allocation5 + $0x378] sm:$0xff]
    %v178 = vld [vmem:[#allocation5 + $0x380] sm:$0xff]
    %v179 = vld [vmem:[#allocation5 + $0x388] sm:$0xff]
    %v180 = vld [vmem:[#allocation5 + $0x390] sm:$0xff]
    %v181 = vld [vmem:[#allocation5 + $0x398] sm:$0xff]
    %v182 = vld [vmem:[#allocation5 + $0x3a0] sm:$0xff]
    %v183 = vld [vmem:[#allocation5 + $0x3a8] sm:$0xff]
    %v184 = vld [vmem:[#allocation5 + $0x3b0] sm:$0xff]
    %v185 = vld [vmem:[#allocation5 + $0x3b8] sm:$0xff]
    %v186 = vld [vmem:[#allocation5 + $0x3c0] sm:$0xff]
    %v187 = vld [vmem:[#allocation5 + $0x3c8] sm:$0xff]
    %v188 = vld [vmem:[#allocation5 + $0x3d0] sm:$0xff]
    %v189 = vld [vmem:[#allocation5 + $0x3d8] sm:$0xff]
    %v190 = vld [vmem:[#allocation5 + $0x3e0] sm:$0xff]
    %v191 = vld [vmem:[#allocation5 + $0x3e8] sm:$0xff]
    %v192 = vld [vmem:[#allocation5 + $0x3f0] sm:$0xff]
    %v193 = vld [vmem:[#allocation5 + $0x3f8] sm:$0xff]
    %v194 = vld [vmem:[#allocation5 + $0x400] sm:$0xff]
    %v195 = vld [vmem:[#allocation5 + $0x408] sm:$0xff]
    %v196 = vld [vmem:[#allocation5 + $0x410] sm:$0xff]
    %v197 = vld [vmem:[#allocation5 + $0x418] sm:$0xff]
    %v198 = vld [vmem:[#allocation5 + $0x420] sm:$0xff]
    %v199 = vld [vmem:[#allocation5 + $0x428] sm:$0xff]
    %v200 = vld [vmem:[#allocation5 + $0x430] sm:$0xff]
    %v201 = vld [vmem:[#allocation5 + $0x438] sm:$0xff]
    %v202 = vld [vmem:[#allocation5 + $0x440] sm:$0xff]
    %v203 = vld [vmem:[#allocation5 + $0x448] sm:$0xff]
    %v204 = vld [vmem:[#allocation5 + $0x450] sm:$0xff]
    %v205 = vld [vmem:[#allocation5 + $0x458] sm:$0xff]
    %v206 = vld [vmem:[#allocation5 + $0x460] sm:$0xff]
    %v207 = vld [vmem:[#allocation5 + $0x468] sm:$0xff]
    %v208 = vld [vmem:[#allocation5 + $0x470] sm:$0xff]
    %v209 = vld [vmem:[#allocation5 + $0x478] sm:$0xff]
    %v210 = vld [vmem:[#allocation5 + $0x480] sm:$0xff]
    %v211 = vld [vmem:[#allocation5 + $0x488] sm:$0xff]
    %v212 = vld [vmem:[#allocation5 + $0x490] sm:$0xff]
    %v213 = vld [vmem:[#allocation5 + $0x498] sm:$0xff]
    %v214 = vld [vmem:[#allocation5 + $0x4a0] sm:$0xff]
    %v215 = vld [vmem:[#allocation5 + $0x4a8] sm:$0xff]
    %v216 = vld [vmem:[#allocation5 + $0x4b0] sm:$0xff]
    %v217 = vld [vmem:[#allocation5 + $0x4b8] sm:$0xff]
    %v218 = vld [vmem:[#allocation5 + $0x4c0] sm:$0xff]
    %v219 = vld [vmem:[#allocation5 + $0x4c8] sm:$0xff]
    %v220 = vld [vmem:[#allocation5 + $0x4d0] sm:$0xff]
    %v221 = vld [vmem:[#allocation5 + $0x4d8] sm:$0xff]
    %v222 = vld [vmem:[#allocation5 + $0x4e0] sm:$0xff]
    %v223 = vld [vmem:[#allocation5 + $0x4e8] sm:$0xff]
    %v224 = vld [vmem:[#allocation5 + $0x4f0] sm:$0xff]
    %v225 = vld [vmem:[#allocation5 + $0x4f8] sm:$0xff]
    %v226 = vld [vmem:[#allocation5 + $0x500] sm:$0xff]
    %v227 = vld [vmem:[#allocation5 + $0x508] sm:$0xff]
    %v228 = vld [vmem:[#allocation5 + $0x510] sm:$0xff]
    %v229 = vld [vmem:[#allocation5 + $0x518] sm:$0xff]
    %v230 = vld [vmem:[#allocation5 + $0x520] sm:$0xff]
    %v231 = vld [vmem:[#allocation5 + $0x528] sm:$0xff]
    %v232 = vld [vmem:[#allocation5 + $0x530] sm:$0xff]
    %v233 = vld [vmem:[#allocation5 + $0x538] sm:$0xff]
    %v234 = vld [vmem:[#allocation5 + $0x540] sm:$0xff]
    %v235 = vld [vmem:[#allocation5 + $0x548] sm:$0xff]
    %v236 = vld [vmem:[#allocation5 + $0x550] sm:$0xff]
    %v237 = vld [vmem:[#allocation5 + $0x558] sm:$0xff]
    %v238 = vld [vmem:[#allocation5 + $0x560] sm:$0xff]
    %v239 = vld [vmem:[#allocation5 + $0x568] sm:$0xff]
    %v240 = vld [vmem:[#allocation5 + $0x570] sm:$0xff]
    %v241 = vld [vmem:[#allocation5 + $0x578] sm:$0xff]
    %v242 = vld [vmem:[#allocation5 + $0x580] sm:$0xff]
    %v243 = vld [vmem:[#allocation5 + $0x588] sm:$0xff]
    %v244 = vld [vmem:[#allocation5 + $0x590] sm:$0xff]
    %v245 = vld [vmem:[#allocation5 + $0x598] sm:$0xff]
    %v246 = vld [vmem:[#allocation5 + $0x5a0] sm:$0xff]
    %v247 = vld [vmem:[#allocation5 + $0x5a8] sm:$0xff]
    %v248 = vld [vmem:[#allocation5 + $0x5b0] sm:$0xff]
    %v249 = vld [vmem:[#allocation5 + $0x5b8] sm:$0xff]
    %v250 = vld [vmem:[#allocation5 + $0x5c0] sm:$0xff]
    %v251 = vld [vmem:[#allocation5 + $0x5c8] sm:$0xff]
    %v252 = vld [vmem:[#allocation5 + $0x5d0] sm:$0xff]
    %v253 = vld [vmem:[#allocation5 + $0x5d8] sm:$0xff]
    %v254 = vld [vmem:[#allocation5 + $0x5e0] sm:$0xff]
    %v255 = vld [vmem:[#allocation5 + $0x5e8] sm:$0xff]
    %v256 = vld [vmem:[#allocation5 + $0x5f0] sm:$0xff]
    %v257 = vld [vmem:[#allocation5 + $0x5f8] sm:$0xff]
    %v262 = vunpack.c.l.b16 %v62
    %v263 = vunpack.c.h.b16 %v62
    %v264 = vunpack.c.l.b16 %v63
    %v265 = vunpack.c.h.b16 %v63
    %v266 = vunpack.c.l.b16 %v64
    %v267 = vunpack.c.h.b16 %v64
    %v268 = vunpack.c.l.b16 %v65
    %v269 = vunpack.c.h.b16 %v65
    %v270 = vpack.c.b16 %v266, %v262
    %v271 = vpack.c.b16 %v267, %v263
    %v272 = vpack.c.b16 %v268, %v264
    %v273 = vpack.c.b16 %v269, %v265
    %v470 = vunpack.c.l.b16 %v66
    %v471 = vunpack.c.h.b16 %v66
    %v472 = vunpack.c.l.b16 %v67
    %v473 = vunpack.c.h.b16 %v67
    %v474 = vunpack.c.l.b16 %v68
    %v475 = vunpack.c.h.b16 %v68
    %v476 = vunpack.c.l.b16 %v69
    %v477 = vunpack.c.h.b16 %v69
    %v478 = vunpack.c.l.b16 %v70
    %v479 = vunpack.c.h.b16 %v70
    %v480 = vunpack.c.l.b16 %v71
    %v481 = vunpack.c.h.b16 %v71
    %v482 = vunpack.c.l.b16 %v72
    %v483 = vunpack.c.h.b16 %v72
    %v484 = vunpack.c.l.b16 %v73
    %v485 = vunpack.c.h.b16 %v73
    %v486 = vunpack.c.l.b16 %v74
    %v487 = vunpack.c.h.b16 %v74
    %v488 = vunpack.c.l.b16 %v75
    %v489 = vunpack.c.h.b16 %v75
    %v490 = vunpack.c.l.b16 %v76
    %v491 = vunpack.c.h.b16 %v76
    %v492 = vunpack.c.l.b16 %v77
    %v493 = vunpack.c.h.b16 %v77
    %v494 = vunpack.c.l.b16 %v78
    %v495 = vunpack.c.h.b16 %v78
    %v496 = vunpack.c.l.b16 %v79
    %v497 = vunpack.c.h.b16 %v79
    %v498 = vunpack.c.l.b16 %v80
    %v499 = vunpack.c.h.b16 %v80
    %v500 = vunpack.c.l.b16 %v81
    %v501 = vunpack.c.h.b16 %v81
    %v502 = vunpack.c.l.b16 %v82
    %v503 = vunpack.c.h.b16 %v82
    %v504 = vunpack.c.l.b16 %v83
    %v505 = vunpack.c.h.b16 %v83
    %v506 = vunpack.c.l.b16 %v84
    %v507 = vunpack.c.h.b16 %v84
    %v508 = vunpack.c.l.b16 %v85
    %v509 = vunpack.c.h.b16 %v85
    %v510 = vunpack.c.l.b16 %v86
    %v511 = vunpack.c.h.b16 %v86
    %v512 = vunpack.c.l.b16 %v87
    %v513 = vunpack.c.h.b16 %v87
    %v514 = vunpack.c.l.b16 %v88
    %v515 = vunpack.c.h.b16 %v88
    %v516 = vunpack.c.l.b16 %v89
    %v517 = vunpack.c.h.b16 %v89
    %v518 = vunpack.c.l.b16 %v90
    %v519 = vunpack.c.h.b16 %v90
    %v520 = vunpack.c.l.b16 %v91
    %v521 = vunpack.c.h.b16 %v91
    %v522 = vunpack.c.l.b16 %v92
    %v523 = vunpack.c.h.b16 %v92
    %v524 = vunpack.c.l.b16 %v93
    %v525 = vunpack.c.h.b16 %v93
    %v526 = vunpack.c.l.b16 %v94
    %v527 = vunpack.c.h.b16 %v94
    %v528 = vunpack.c.l.b16 %v95
    %v529 = vunpack.c.h.b16 %v95
    %v530 = vunpack.c.l.b16 %v96
    %v531 = vunpack.c.h.b16 %v96
    %v532 = vunpack.c.l.b16 %v97
    %v533 = vunpack.c.h.b16 %v97
    %v534 = vunpack.c.l.b16 %v98
    %v535 = vunpack.c.h.b16 %v98
    %v536 = vunpack.c.l.b16 %v99
    %v537 = vunpack.c.h.b16 %v99
    %v538 = vunpack.c.l.b16 %v100
    %v539 = vunpack.c.h.b16 %v100
    %v540 = vunpack.c.l.b16 %v101
    %v541 = vunpack.c.h.b16 %v101
    %v542 = vunpack.c.l.b16 %v102
    %v543 = vunpack.c.h.b16 %v102
    %v544 = vunpack.c.l.b16 %v103
    %v545 = vunpack.c.h.b16 %v103
    %v546 = vunpack.c.l.b16 %v104
    %v547 = vunpack.c.h.b16 %v104
    %v548 = vunpack.c.l.b16 %v105
    %v549 = vunpack.c.h.b16 %v105
    %v550 = vunpack.c.l.b16 %v106
    %v551 = vunpack.c.h.b16 %v106
    %v552 = vunpack.c.l.b16 %v107
    %v553 = vunpack.c.h.b16 %v107
    %v554 = vunpack.c.l.b16 %v108
    %v555 = vunpack.c.h.b16 %v108
    %v556 = vunpack.c.l.b16 %v109
    %v557 = vunpack.c.h.b16 %v109
    %v558 = vunpack.c.l.b16 %v110
    %v559 = vunpack.c.h.b16 %v110
    %v560 = vunpack.c.l.b16 %v111
    %v561 = vunpack.c.h.b16 %v111
    %v562 = vunpack.c.l.b16 %v112
    %v563 = vunpack.c.h.b16 %v112
    %v564 = vunpack.c.l.b16 %v113
    %v565 = vunpack.c.h.b16 %v113
    %v566 = vunpack.c.l.b16 %v114
    %v567 = vunpack.c.h.b16 %v114
    %v568 = vunpack.c.l.b16 %v115
    %v569 = vunpack.c.h.b16 %v115
    %v570 = vunpack.c.l.b16 %v116
    %v571 = vunpack.c.h.b16 %v116
    %v572 = vunpack.c.l.b16 %v117
    %v573 = vunpack.c.h.b16 %v117
    %v574 = vunpack.c.l.b16 %v118
    %v575 = vunpack.c.h.b16 %v118
    %v576 = vunpack.c.l.b16 %v119
    %v577 = vunpack.c.h.b16 %v119
    %v578 = vunpack.c.l.b16 %v120
    %v579 = vunpack.c.h.b16 %v120
    %v580 = vunpack.c.l.b16 %v121
    %v581 = vunpack.c.h.b16 %v121
    %v582 = vunpack.c.l.b16 %v122
    %v583 = vunpack.c.h.b16 %v122
    %v584 = vunpack.c.l.b16 %v123
    %v585 = vunpack.c.h.b16 %v123
    %v586 = vunpack.c.l.b16 %v124
    %v587 = vunpack.c.h.b16 %v124
    %v588 = vunpack.c.l.b16 %v125
    %v589 = vunpack.c.h.b16 %v125
    %v590 = vunpack.c.l.b16 %v126
    %v591 = vunpack.c.h.b16 %v126
    %v592 = vunpack.c.l.b16 %v127
    %v593 = vunpack.c.h.b16 %v127
    %v594 = vunpack.c.l.b16 %v128
    %v595 = vunpack.c.h.b16 %v128
    %v596 = vunpack.c.l.b16 %v129
    %v597 = vunpack.c.h.b16 %v129
    %v598 = vunpack.c.l.b16 %v130
    %v599 = vunpack.c.h.b16 %v130
    %v600 = vunpack.c.l.b16 %v131
    %v601 = vunpack.c.h.b16 %v131
    %v602 = vunpack.c.l.b16 %v132
    %v603 = vunpack.c.h.b16 %v132
    %v604 = vunpack.c.l.b16 %v133
    %v605 = vunpack.c.h.b16 %v133
    %v606 = vunpack.c.l.b16 %v134
    %v607 = vunpack.c.h.b16 %v134
    %v608 = vunpack.c.l.b16 %v135
    %v609 = vunpack.c.h.b16 %v135
    %v610 = vunpack.c.l.b16 %v136
    %v611 = vunpack.c.h.b16 %v136
    %v612 = vunpack.c.l.b16 %v137
    %v613 = vunpack.c.h.b16 %v137
    %v614 = vunpack.c.l.b16 %v138
    %v615 = vunpack.c.h.b16 %v138
    %v616 = vunpack.c.l.b16 %v139
    %v617 = vunpack.c.h.b16 %v139
    %v618 = vunpack.c.l.b16 %v140
    %v619 = vunpack.c.h.b16 %v140
    %v620 = vunpack.c.l.b16 %v141
    %v621 = vunpack.c.h.b16 %v141
    %v622 = vunpack.c.l.b16 %v142
    %v623 = vunpack.c.h.b16 %v142
    %v624 = vunpack.c.l.b16 %v143
    %v625 = vunpack.c.h.b16 %v143
    %v626 = vunpack.c.l.b16 %v144
    %v627 = vunpack.c.h.b16 %v144
    %v628 = vunpack.c.l.b16 %v145
    %v629 = vunpack.c.h.b16 %v145
    %v630 = vunpack.c.l.b16 %v146
    %v631 = vunpack.c.h.b16 %v146
    %v632 = vunpack.c.l.b16 %v147
    %v633 = vunpack.c.h.b16 %v147
    %v634 = vunpack.c.l.b16 %v148
    %v635 = vunpack.c.h.b16 %v148
    %v636 = vunpack.c.l.b16 %v149
    %v637 = vunpack.c.h.b16 %v149
    %v638 = vunpack.c.l.b16 %v150
    %v639 = vunpack.c.h.b16 %v150
    %v640 = vunpack.c.l.b16 %v151
    %v641 = vunpack.c.h.b16 %v151
    %v642 = vunpack.c.l.b16 %v152
    %v643 = vunpack.c.h.b16 %v152
    %v644 = vunpack.c.l.b16 %v153
    %v645 = vunpack.c.h.b16 %v153
    %v646 = vunpack.c.l.b16 %v154
    %v647 = vunpack.c.h.b16 %v154
    %v648 = vunpack.c.l.b16 %v155
    %v649 = vunpack.c.h.b16 %v155
    %v650 = vunpack.c.l.b16 %v156
    %v651 = vunpack.c.h.b16 %v156
    %v652 = vunpack.c.l.b16 %v157
    %v653 = vunpack.c.h.b16 %v157
    %v654 = vunpack.c.l.b16 %v158
    %v655 = vunpack.c.h.b16 %v158
    %v656 = vunpack.c.l.b16 %v159
    %v657 = vunpack.c.h.b16 %v159
    %v658 = vunpack.c.l.b16 %v160
    %v659 = vunpack.c.h.b16 %v160
    %v660 = vunpack.c.l.b16 %v161
    %v661 = vunpack.c.h.b16 %v161
    %v662 = vunpack.c.l.b16 %v162
    %v663 = vunpack.c.h.b16 %v162
    %v664 = vunpack.c.l.b16 %v163
    %v665 = vunpack.c.h.b16 %v163
    %v666 = vunpack.c.l.b16 %v164
    %v667 = vunpack.c.h.b16 %v164
    %v668 = vunpack.c.l.b16 %v165
    %v669 = vunpack.c.h.b16 %v165
    %v670 = vunpack.c.l.b16 %v166
    %v671 = vunpack.c.h.b16 %v166
    %v672 = vunpack.c.l.b16 %v167
    %v673 = vunpack.c.h.b16 %v167
    %v674 = vunpack.c.l.b16 %v168
    %v675 = vunpack.c.h.b16 %v168
    %v676 = vunpack.c.l.b16 %v169
    %v677 = vunpack.c.h.b16 %v169
    %v678 = vunpack.c.l.b16 %v170
    %v679 = vunpack.c.h.b16 %v170
    %v680 = vunpack.c.l.b16 %v171
    %v681 = vunpack.c.h.b16 %v171
    %v682 = vunpack.c.l.b16 %v172
    %v683 = vunpack.c.h.b16 %v172
    %v684 = vunpack.c.l.b16 %v173
    %v685 = vunpack.c.h.b16 %v173
    %v686 = vunpack.c.l.b16 %v174
    %v687 = vunpack.c.h.b16 %v174
    %v688 = vunpack.c.l.b16 %v175
    %v689 = vunpack.c.h.b16 %v175
    %v690 = vunpack.c.l.b16 %v176
    %v691 = vunpack.c.h.b16 %v176
    %v692 = vunpack.c.l.b16 %v177
    %v693 = vunpack.c.h.b16 %v177
    %v694 = vunpack.c.l.b16 %v178
    %v695 = vunpack.c.h.b16 %v178
    %v696 = vunpack.c.l.b16 %v179
    %v697 = vunpack.c.h.b16 %v179
    %v698 = vunpack.c.l.b16 %v180
    %v699 = vunpack.c.h.b16 %v180
    %v700 = vunpack.c.l.b16 %v181
    %v701 = vunpack.c.h.b16 %v181
    %v702 = vunpack.c.l.b16 %v182
    %v703 = vunpack.c.h.b16 %v182
    %v704 = vunpack.c.l.b16 %v183
    %v705 = vunpack.c.h.b16 %v183
    %v706 = vunpack.c.l.b16 %v184
    %v707 = vunpack.c.h.b16 %v184
    %v708 = vunpack.c.l.b16 %v185
    %v709 = vunpack.c.h.b16 %v185
    %v710 = vunpack.c.l.b16 %v186
    %v711 = vunpack.c.h.b16 %v186
    %v712 = vunpack.c.l.b16 %v187
    %v713 = vunpack.c.h.b16 %v187
    %v714 = vunpack.c.l.b16 %v188
    %v715 = vunpack.c.h.b16 %v188
    %v716 = vunpack.c.l.b16 %v189
    %v717 = vunpack.c.h.b16 %v189
    %v718 = vunpack.c.l.b16 %v190
    %v719 = vunpack.c.h.b16 %v190
    %v720 = vunpack.c.l.b16 %v191
    %v721 = vunpack.c.h.b16 %v191
    %v722 = vunpack.c.l.b16 %v192
    %v723 = vunpack.c.h.b16 %v192
    %v724 = vunpack.c.l.b16 %v193
    %v725 = vunpack.c.h.b16 %v193
    %v726 = vunpack.c.l.b16 %v194
    %v727 = vunpack.c.h.b16 %v194
    %v728 = vunpack.c.l.b16 %v195
    %v729 = vunpack.c.h.b16 %v195
    %v730 = vunpack.c.l.b16 %v196
    %v731 = vunpack.c.h.b16 %v196
    %v732 = vunpack.c.l.b16 %v197
    %v733 = vunpack.c.h.b16 %v197
    %v734 = vunpack.c.l.b16 %v198
    %v735 = vunpack.c.h.b16 %v198
    %v736 = vunpack.c.l.b16 %v199
    %v737 = vunpack.c.h.b16 %v199
    %v738 = vunpack.c.l.b16 %v200
    %v739 = vunpack.c.h.b16 %v200
    %v740 = vunpack.c.l.b16 %v201
    %v741 = vunpack.c.h.b16 %v201
    %v742 = vunpack.c.l.b16 %v202
    %v743 = vunpack.c.h.b16 %v202
    %v744 = vunpack.c.l.b16 %v203
    %v745 = vunpack.c.h.b16 %v203
    %v746 = vunpack.c.l.b16 %v204
    %v747 = vunpack.c.h.b16 %v204
    %v748 = vunpack.c.l.b16 %v205
    %v749 = vunpack.c.h.b16 %v205
    %v750 = vunpack.c.l.b16 %v206
    %v751 = vunpack.c.h.b16 %v206
    %v752 = vunpack.c.l.b16 %v207
    %v753 = vunpack.c.h.b16 %v207
    %v754 = vunpack.c.l.b16 %v208
    %v755 = vunpack.c.h.b16 %v208
    %v756 = vunpack.c.l.b16 %v209
    %v757 = vunpack.c.h.b16 %v209
    %v758 = vunpack.c.l.b16 %v210
    %v759 = vunpack.c.h.b16 %v210
    %v760 = vunpack.c.l.b16 %v211
    %v761 = vunpack.c.h.b16 %v211
    %v762 = vunpack.c.l.b16 %v212
    %v763 = vunpack.c.h.b16 %v212
    %v764 = vunpack.c.l.b16 %v213
    %v765 = vunpack.c.h.b16 %v213
    %v766 = vunpack.c.l.b16 %v214
    %v767 = vunpack.c.h.b16 %v214
    %v768 = vunpack.c.l.b16 %v215
    %v769 = vunpack.c.h.b16 %v215
    %v770 = vunpack.c.l.b16 %v216
    %v771 = vunpack.c.h.b16 %v216
    %v772 = vunpack.c.l.b16 %v217
    %v773 = vunpack.c.h.b16 %v217
    %v774 = vunpack.c.l.b16 %v218
    %v775 = vunpack.c.h.b16 %v218
    %v776 = vunpack.c.l.b16 %v219
    %v777 = vunpack.c.h.b16 %v219
    %v778 = vunpack.c.l.b16 %v220
    %v779 = vunpack.c.h.b16 %v220
    %v780 = vunpack.c.l.b16 %v221
    %v781 = vunpack.c.h.b16 %v221
    %v782 = vunpack.c.l.b16 %v222
    %v783 = vunpack.c.h.b16 %v222
    %v784 = vunpack.c.l.b16 %v223
    %v785 = vunpack.c.h.b16 %v223
    %v786 = vunpack.c.l.b16 %v224
    %v787 = vunpack.c.h.b16 %v224
    %v788 = vunpack.c.l.b16 %v225
    %v789 = vunpack.c.h.b16 %v225
    %v790 = vunpack.c.l.b16 %v226
    %v791 = vunpack.c.h.b16 %v226
    %v792 = vunpack.c.l.b16 %v227
    %v793 = vunpack.c.h.b16 %v227
    %v794 = vunpack.c.l.b16 %v228
    %v795 = vunpack.c.h.b16 %v228
    %v796 = vunpack.c.l.b16 %v229
    %v797 = vunpack.c.h.b16 %v229
    %v798 = vunpack.c.l.b16 %v230
    %v799 = vunpack.c.h.b16 %v230
    %v800 = vunpack.c.l.b16 %v231
    %v801 = vunpack.c.h.b16 %v231
    %v802 = vunpack.c.l.b16 %v232
    %v803 = vunpack.c.h.b16 %v232
    %v804 = vunpack.c.l.b16 %v233
    %v805 = vunpack.c.h.b16 %v233
    %v806 = vunpack.c.l.b16 %v234
    %v807 = vunpack.c.h.b16 %v234
    %v808 = vunpack.c.l.b16 %v235
    %v809 = vunpack.c.h.b16 %v235
    %v810 = vunpack.c.l.b16 %v236
    %v811 = vunpack.c.h.b16 %v236
    %v812 = vunpack.c.l.b16 %v237
    %v813 = vunpack.c.h.b16 %v237
    %v814 = vunpack.c.l.b16 %v238
    %v815 = vunpack.c.h.b16 %v238
    %v816 = vunpack.c.l.b16 %v239
    %v817 = vunpack.c.h.b16 %v239
    %v818 = vunpack.c.l.b16 %v240
    %v819 = vunpack.c.h.b16 %v240
    %v820 = vunpack.c.l.b16 %v241
    %v821 = vunpack.c.h.b16 %v241
    %v822 = vunpack.c.l.b16 %v242
    %v823 = vunpack.c.h.b16 %v242
    %v824 = vunpack.c.l.b16 %v243
    %v825 = vunpack.c.h.b16 %v243
    %v826 = vunpack.c.l.b16 %v244
    %v827 = vunpack.c.h.b16 %v244
    %v828 = vunpack.c.l.b16 %v245
    %v829 = vunpack.c.h.b16 %v245
    %v830 = vunpack.c.l.b16 %v246
    %v831 = vunpack.c.h.b16 %v246
    %v832 = vunpack.c.l.b16 %v247
    %v833 = vunpack.c.h.b16 %v247
    %v834 = vunpack.c.l.b16 %v248
    %v835 = vunpack.c.h.b16 %v248
    %v836 = vunpack.c.l.b16 %v249
    %v837 = vunpack.c.h.b16 %v249
    %v838 = vunpack.c.l.b16 %v250
    %v839 = vunpack.c.h.b16 %v250
    %v840 = vunpack.c.l.b16 %v251
    %v841 = vunpack.c.h.b16 %v251
    %v842 = vunpack.c.l.b16 %v252
    %v843 = vunpack.c.h.b16 %v252
    %v844 = vunpack.c.l.b16 %v253
    %v845 = vunpack.c.h.b16 %v253
    %v846 = vunpack.c.l.b16 %v254
    %v847 = vunpack.c.h.b16 %v254
    %v848 = vunpack.c.l.b16 %v255
    %v849 = vunpack.c.h.b16 %v255
    %v850 = vunpack.c.l.b16 %v256
    %v851 = vunpack.c.h.b16 %v256
    %v852 = vunpack.c.l.b16 %v257
    %v853 = vunpack.c.h.b16 %v257
    %v854 = vpack.c.b16 %v476, %v470
    %v855 = vpack.c.b16 %v477, %v471
    %v856 = vpack.c.b16 %v478, %v472
    %v857 = vpack.c.b16 %v479, %v473
    %v858 = vpack.c.b16 %v480, %v474
    %v859 = vpack.c.b16 %v481, %v475
    %v860 = vpack.c.b16 %v488, %v482
    %v861 = vpack.c.b16 %v489, %v483
    %v862 = vpack.c.b16 %v490, %v484
    %v863 = vpack.c.b16 %v491, %v485
    %v864 = vpack.c.b16 %v492, %v486
    %v865 = vpack.c.b16 %v493, %v487
    %v866 = vpack.c.b16 %v500, %v494
    %v867 = vpack.c.b16 %v501, %v495
    %v868 = vpack.c.b16 %v502, %v496
    %v869 = vpack.c.b16 %v503, %v497
    %v870 = vpack.c.b16 %v504, %v498
    %v871 = vpack.c.b16 %v505, %v499
    %v872 = vpack.c.b16 %v512, %v506
    %v873 = vpack.c.b16 %v513, %v507
    %v874 = vpack.c.b16 %v514, %v508
    %v875 = vpack.c.b16 %v515, %v509
    %v876 = vpack.c.b16 %v516, %v510
    %v877 = vpack.c.b16 %v517, %v511
    %v878 = vpack.c.b16 %v524, %v518
    %v879 = vpack.c.b16 %v525, %v519
    %v880 = vpack.c.b16 %v526, %v520
    %v881 = vpack.c.b16 %v527, %v521
    %v882 = vpack.c.b16 %v528, %v522
    %v883 = vpack.c.b16 %v529, %v523
    %v884 = vpack.c.b16 %v536, %v530
    %v885 = vpack.c.b16 %v537, %v531
    %v886 = vpack.c.b16 %v538, %v532
    %v887 = vpack.c.b16 %v539, %v533
    %v888 = vpack.c.b16 %v540, %v534
    %v889 = vpack.c.b16 %v541, %v535
    %v890 = vpack.c.b16 %v548, %v542
    %v891 = vpack.c.b16 %v549, %v543
    %v892 = vpack.c.b16 %v550, %v544
    %v893 = vpack.c.b16 %v551, %v545
    %v894 = vpack.c.b16 %v552, %v546
    %v895 = vpack.c.b16 %v553, %v547
    %v896 = vpack.c.b16 %v560, %v554
    %v897 = vpack.c.b16 %v561, %v555
    %v898 = vpack.c.b16 %v562, %v556
    %v899 = vpack.c.b16 %v563, %v557
    %v900 = vpack.c.b16 %v564, %v558
    %v901 = vpack.c.b16 %v565, %v559
    %v902 = vpack.c.b16 %v572, %v566
    %v903 = vpack.c.b16 %v573, %v567
    %v904 = vpack.c.b16 %v574, %v568
    %v905 = vpack.c.b16 %v575, %v569
    %v906 = vpack.c.b16 %v576, %v570
    %v907 = vpack.c.b16 %v577, %v571
    %v908 = vpack.c.b16 %v584, %v578
    %v909 = vpack.c.b16 %v585, %v579
    %v910 = vpack.c.b16 %v586, %v580
    %v911 = vpack.c.b16 %v587, %v581
    %v912 = vpack.c.b16 %v588, %v582
    %v913 = vpack.c.b16 %v589, %v583
    %v914 = vpack.c.b16 %v596, %v590
    %v915 = vpack.c.b16 %v597, %v591
    %v916 = vpack.c.b16 %v598, %v592
    %v917 = vpack.c.b16 %v599, %v593
    %v918 = vpack.c.b16 %v600, %v594
    %v919 = vpack.c.b16 %v601, %v595
    %v920 = vpack.c.b16 %v608, %v602
    %v921 = vpack.c.b16 %v609, %v603
    %v922 = vpack.c.b16 %v610, %v604
    %v923 = vpack.c.b16 %v611, %v605
    %v924 = vpack.c.b16 %v612, %v606
    %v925 = vpack.c.b16 %v613, %v607
    %v926 = vpack.c.b16 %v620, %v614
    %v927 = vpack.c.b16 %v621, %v615
    %v928 = vpack.c.b16 %v622, %v616
    %v929 = vpack.c.b16 %v623, %v617
    %v930 = vpack.c.b16 %v624, %v618
    %v931 = vpack.c.b16 %v625, %v619
    %v932 = vpack.c.b16 %v632, %v626
    %v933 = vpack.c.b16 %v633, %v627
    %v934 = vpack.c.b16 %v634, %v628
    %v935 = vpack.c.b16 %v635, %v629
    %v936 = vpack.c.b16 %v636, %v630
    %v937 = vpack.c.b16 %v637, %v631
    %v938 = vpack.c.b16 %v644, %v638
    %v939 = vpack.c.b16 %v645, %v639
    %v940 = vpack.c.b16 %v646, %v640
    %v941 = vpack.c.b16 %v647, %v641
    %v942 = vpack.c.b16 %v648, %v642
    %v943 = vpack.c.b16 %v649, %v643
    %v944 = vpack.c.b16 %v656, %v650
    %v945 = vpack.c.b16 %v657, %v651
    %v946 = vpack.c.b16 %v658, %v652
    %v947 = vpack.c.b16 %v659, %v653
    %v948 = vpack.c.b16 %v660, %v654
    %v949 = vpack.c.b16 %v661, %v655
    %v950 = vpack.c.b16 %v668, %v662
    %v951 = vpack.c.b16 %v669, %v663
    %v952 = vpack.c.b16 %v670, %v664
    %v953 = vpack.c.b16 %v671, %v665
    %v954 = vpack.c.b16 %v672, %v666
    %v955 = vpack.c.b16 %v673, %v667
    %v956 = vpack.c.b16 %v680, %v674
    %v957 = vpack.c.b16 %v681, %v675
    %v958 = vpack.c.b16 %v682, %v676
    %v959 = vpack.c.b16 %v683, %v677
    %v960 = vpack.c.b16 %v684, %v678
    %v961 = vpack.c.b16 %v685, %v679
    %v962 = vpack.c.b16 %v692, %v686
    %v963 = vpack.c.b16 %v693, %v687
    %v964 = vpack.c.b16 %v694, %v688
    %v965 = vpack.c.b16 %v695, %v689
    %v966 = vpack.c.b16 %v696, %v690
    %v967 = vpack.c.b16 %v697, %v691
    %v968 = vpack.c.b16 %v704, %v698
    %v969 = vpack.c.b16 %v705, %v699
    %v970 = vpack.c.b16 %v706, %v700
    %v971 = vpack.c.b16 %v707, %v701
    %v972 = vpack.c.b16 %v708, %v702
    %v973 = vpack.c.b16 %v709, %v703
    %v974 = vpack.c.b16 %v716, %v710
    %v975 = vpack.c.b16 %v717, %v711
    %v976 = vpack.c.b16 %v718, %v712
    %v977 = vpack.c.b16 %v719, %v713
    %v978 = vpack.c.b16 %v720, %v714
    %v979 = vpack.c.b16 %v721, %v715
    %v980 = vpack.c.b16 %v728, %v722
    %v981 = vpack.c.b16 %v729, %v723
    %v982 = vpack.c.b16 %v730, %v724
    %v983 = vpack.c.b16 %v731, %v725
    %v984 = vpack.c.b16 %v732, %v726
    %v985 = vpack.c.b16 %v733, %v727
    %v986 = vpack.c.b16 %v740, %v734
    %v987 = vpack.c.b16 %v741, %v735
    %v988 = vpack.c.b16 %v742, %v736
    %v989 = vpack.c.b16 %v743, %v737
    %v990 = vpack.c.b16 %v744, %v738
    %v991 = vpack.c.b16 %v745, %v739
    %v992 = vpack.c.b16 %v752, %v746
    %v993 = vpack.c.b16 %v753, %v747
    %v994 = vpack.c.b16 %v754, %v748
    %v995 = vpack.c.b16 %v755, %v749
    %v996 = vpack.c.b16 %v756, %v750
    %v997 = vpack.c.b16 %v757, %v751
    %v998 = vpack.c.b16 %v764, %v758
    %v999 = vpack.c.b16 %v765, %v759
    %v1000 = vpack.c.b16 %v766, %v760
    %v1001 = vpack.c.b16 %v767, %v761
    %v1002 = vpack.c.b16 %v768, %v762
    %v1003 = vpack.c.b16 %v769, %v763
    %v1004 = vpack.c.b16 %v776, %v770
    %v1005 = vpack.c.b16 %v777, %v771
    %v1006 = vpack.c.b16 %v778, %v772
    %v1007 = vpack.c.b16 %v779, %v773
    %v1008 = vpack.c.b16 %v780, %v774
    %v1009 = vpack.c.b16 %v781, %v775
    %v1010 = vpack.c.b16 %v788, %v782
    %v1011 = vpack.c.b16 %v789, %v783
    %v1012 = vpack.c.b16 %v790, %v784
    %v1013 = vpack.c.b16 %v791, %v785
    %v1014 = vpack.c.b16 %v792, %v786
    %v1015 = vpack.c.b16 %v793, %v787
    %v1016 = vpack.c.b16 %v800, %v794
    %v1017 = vpack.c.b16 %v801, %v795
    %v1018 = vpack.c.b16 %v802, %v796
    %v1019 = vpack.c.b16 %v803, %v797
    %v1020 = vpack.c.b16 %v804, %v798
    %v1021 = vpack.c.b16 %v805, %v799
    %v1022 = vpack.c.b16 %v812, %v806
    %v1023 = vpack.c.b16 %v813, %v807
    %v1024 = vpack.c.b16 %v814, %v808
    %v1025 = vpack.c.b16 %v815, %v809
    %v1026 = vpack.c.b16 %v816, %v810
    %v1027 = vpack.c.b16 %v817, %v811
    %v1028 = vpack.c.b16 %v824, %v818
    %v1029 = vpack.c.b16 %v825, %v819
    %v1030 = vpack.c.b16 %v826, %v820
    %v1031 = vpack.c.b16 %v827, %v821
    %v1032 = vpack.c.b16 %v828, %v822
    %v1033 = vpack.c.b16 %v829, %v823
    %v1034 = vpack.c.b16 %v836, %v830
    %v1035 = vpack.c.b16 %v837, %v831
    %v1036 = vpack.c.b16 %v838, %v832
    %v1037 = vpack.c.b16 %v839, %v833
    %v1038 = vpack.c.b16 %v840, %v834
    %v1039 = vpack.c.b16 %v841, %v835
    %v1040 = vpack.c.b16 %v848, %v842
    %v1041 = vpack.c.b16 %v849, %v843
    %v1042 = vpack.c.b16 %v850, %v844
    %v1043 = vpack.c.b16 %v851, %v845
    %v1044 = vpack.c.b16 %v852, %v846
    %v1045 = vpack.c.b16 %v853, %v847
    %1238 = vmatpush.bf16.msra.mxu0 %v896
    %1239 = vmatpush.bf16.msra.mxu0 %v890
    %1240 = vmatpush.bf16.msra.mxu0 %v884
    %1241 = vmatpush.bf16.msra.mxu0 %v878
    %1242 = vmatpush.bf16.msra.mxu0 %v872
    %1243 = vmatpush.bf16.msra.mxu0 %v866
    %1244 = vmatpush.bf16.msra.mxu0 %v860
    %1245 = vmatpush.bf16.msra.mxu0 %v854
    %1246 = vmatmul.bf16.gmra.mxu0 %v270
    %v1247 = vpop.f32.mrf.mxu0
    %v1248 = vadd.f32 0.0, %v1247
    %v1249 = vpop.f32.mrf.mxu0
    %v1250 = vadd.f32 0.0, %v1249
    %1251 = vdwg.mxu0
    %1252 = vmatpush.bf16.msra.mxu0 %v944
    %1253 = vmatpush.bf16.msra.mxu0 %v938
    %1254 = vmatpush.bf16.msra.mxu0 %v932
    %1255 = vmatpush.bf16.msra.mxu0 %v926
    %1256 = vmatpush.bf16.msra.mxu0 %v920
    %1257 = vmatpush.bf16.msra.mxu0 %v914
    %1258 = vmatpush.bf16.msra.mxu0 %v908
    %1259 = vmatpush.bf16.msra.mxu0 %v902
    %1260 = vmatmul.bf16.gmra.mxu0 %v271
    %v1261 = vpop.f32.mrf.mxu0
    %v1262 = vadd.f32 %v1248, %v1261
    %v1263 = vpop.f32.mrf.mxu0
    %v1264 = vadd.f32 %v1250, %v1263
    %1265 = vdwg.mxu0
    %1266 = vmatpush.bf16.msra.mxu0 %v992
    %1267 = vmatpush.bf16.msra.mxu0 %v986
    %1268 = vmatpush.bf16.msra.mxu0 %v980
    %1269 = vmatpush.bf16.msra.mxu0 %v974
    %1270 = vmatpush.bf16.msra.mxu0 %v968
    %1271 = vmatpush.bf16.msra.mxu0 %v962
    %1272 = vmatpush.bf16.msra.mxu0 %v956
    %1273 = vmatpush.bf16.msra.mxu0 %v950
    %1274 = vmatmul.bf16.gmra.mxu0 %v272
    %v1275 = vpop.f32.mrf.mxu0
    %v1276 = vadd.f32 %v1262, %v1275
    %v1277 = vpop.f32.mrf.mxu0
    %v1278 = vadd.f32 %v1264, %v1277
    %1279 = vdwg.mxu0
    %1280 = vmatpush.bf16.msra.mxu0 %v1040
    %1281 = vmatpush.bf16.msra.mxu0 %v1034
    %1282 = vmatpush.bf16.msra.mxu0 %v1028
    %1283 = vmatpush.bf16.msra.mxu0 %v1022
    %1284 = vmatpush.bf16.msra.mxu0 %v1016
    %1285 = vmatpush.bf16.msra.mxu0 %v1010
    %1286 = vmatpush.bf16.msra.mxu0 %v1004
    %1287 = vmatpush.bf16.msra.mxu0 %v998
    %1288 = vmatmul.bf16.gmra.mxu0 %v273
    %v1289 = vpop.f32.mrf.mxu0
    %v1290 = vadd.f32 %v1276, %v1289
    %v1291 = vpop.f32.mrf.mxu0
    %v1292 = vadd.f32 %v1278, %v1291
    %1293 = vdwg.mxu0
    %1294 = vmatpush.bf16.msra.mxu0 %v897
    %1295 = vmatpush.bf16.msra.mxu0 %v891
    %1296 = vmatpush.bf16.msra.mxu0 %v885
    %1297 = vmatpush.bf16.msra.mxu0 %v879
    %1298 = vmatpush.bf16.msra.mxu0 %v873
    %1299 = vmatpush.bf16.msra.mxu0 %v867
    %1300 = vmatpush.bf16.msra.mxu0 %v861
    %1301 = vmatpush.bf16.msra.mxu0 %v855
    %1302 = vmatmul.bf16.gmra.mxu0 %v270
    %v1303 = vpop.f32.mrf.mxu0
    %v1304 = vadd.f32 0.0, %v1303
    %v1305 = vpop.f32.mrf.mxu0
    %v1306 = vadd.f32 0.0, %v1305
    %1307 = vdwg.mxu0
    %1308 = vmatpush.bf16.msra.mxu0 %v945
    %1309 = vmatpush.bf16.msra.mxu0 %v939
    %1310 = vmatpush.bf16.msra.mxu0 %v933
    %1311 = vmatpush.bf16.msra.mxu0 %v927
    %1312 = vmatpush.bf16.msra.mxu0 %v921
    %1313 = vmatpush.bf16.msra.mxu0 %v915
    %1314 = vmatpush.bf16.msra.mxu0 %v909
    %1315 = vmatpush.bf16.msra.mxu0 %v903
    %1316 = vmatmul.bf16.gmra.mxu0 %v271
    %v1317 = vpop.f32.mrf.mxu0
    %v1318 = vadd.f32 %v1304, %v1317
    %v1319 = vpop.f32.mrf.mxu0
    %v1320 = vadd.f32 %v1306, %v1319
    %1321 = vdwg.mxu0
    %1322 = vmatpush.bf16.msra.mxu0 %v993
    %1323 = vmatpush.bf16.msra.mxu0 %v987
    %1324 = vmatpush.bf16.msra.mxu0 %v981
    %1325 = vmatpush.bf16.msra.mxu0 %v975
    %1326 = vmatpush.bf16.msra.mxu0 %v969
    %1327 = vmatpush.bf16.msra.mxu0 %v963
    %1328 = vmatpush.bf16.msra.mxu0 %v957
    %1329 = vmatpush.bf16.msra.mxu0 %v951
    %1330 = vmatmul.bf16.gmra.mxu0 %v272
    %v1331 = vpop.f32.mrf.mxu0
    %v1332 = vadd.f32 %v1318, %v1331
    %v1333 = vpop.f32.mrf.mxu0
    %v1334 = vadd.f32 %v1320, %v1333
    %1335 = vdwg.mxu0
    %1336 = vmatpush.bf16.msra.mxu0 %v1041
    %1337 = vmatpush.bf16.msra.mxu0 %v1035
    %1338 = vmatpush.bf16.msra.mxu0 %v1029
    %1339 = vmatpush.bf16.msra.mxu0 %v1023
    %1340 = vmatpush.bf16.msra.mxu0 %v1017
    %1341 = vmatpush.bf16.msra.mxu0 %v1011
    %1342 = vmatpush.bf16.msra.mxu0 %v1005
    %1343 = vmatpush.bf16.msra.mxu0 %v999
    %1344 = vmatmul.bf16.gmra.mxu0 %v273
    %v1345 = vpop.f32.mrf.mxu0
    %v1346 = vadd.f32 %v1332, %v1345
    %v1347 = vpop.f32.mrf.mxu0
    %v1348 = vadd.f32 %v1334, %v1347
    %1349 = vdwg.mxu0
    %1350 = vmatpush.bf16.msra.mxu0 %v898
    %1351 = vmatpush.bf16.msra.mxu0 %v892
    %1352 = vmatpush.bf16.msra.mxu0 %v886
    %1353 = vmatpush.bf16.msra.mxu0 %v880
    %1354 = vmatpush.bf16.msra.mxu0 %v874
    %1355 = vmatpush.bf16.msra.mxu0 %v868
    %1356 = vmatpush.bf16.msra.mxu0 %v862
    %1357 = vmatpush.bf16.msra.mxu0 %v856
    %1358 = vmatmul.bf16.gmra.mxu0 %v270
    %v1359 = vpop.f32.mrf.mxu0
    %v1360 = vadd.f32 0.0, %v1359
    %v1361 = vpop.f32.mrf.mxu0
    %v1362 = vadd.f32 0.0, %v1361
    %1363 = vdwg.mxu0
    %1364 = vmatpush.bf16.msra.mxu0 %v946
    %1365 = vmatpush.bf16.msra.mxu0 %v940
    %1366 = vmatpush.bf16.msra.mxu0 %v934
    %1367 = vmatpush.bf16.msra.mxu0 %v928
    %1368 = vmatpush.bf16.msra.mxu0 %v922
    %1369 = vmatpush.bf16.msra.mxu0 %v916
    %1370 = vmatpush.bf16.msra.mxu0 %v910
    %1371 = vmatpush.bf16.msra.mxu0 %v904
    %1372 = vmatmul.bf16.gmra.mxu0 %v271
    %v1373 = vpop.f32.mrf.mxu0
    %v1374 = vadd.f32 %v1360, %v1373
    %v1375 = vpop.f32.mrf.mxu0
    %v1376 = vadd.f32 %v1362, %v1375
    %1377 = vdwg.mxu0
    %1378 = vmatpush.bf16.msra.mxu0 %v994
    %1379 = vmatpush.bf16.msra.mxu0 %v988
    %1380 = vmatpush.bf16.msra.mxu0 %v982
    %1381 = vmatpush.bf16.msra.mxu0 %v976
    %1382 = vmatpush.bf16.msra.mxu0 %v970
    %1383 = vmatpush.bf16.msra.mxu0 %v964
    %1384 = vmatpush.bf16.msra.mxu0 %v958
    %1385 = vmatpush.bf16.msra.mxu0 %v952
    %1386 = vmatmul.bf16.gmra.mxu0 %v272
    %v1387 = vpop.f32.mrf.mxu0
    %v1388 = vadd.f32 %v1374, %v1387
    %v1389 = vpop.f32.mrf.mxu0
    %v1390 = vadd.f32 %v1376, %v1389
    %1391 = vdwg.mxu0
    %1392 = vmatpush.bf16.msra.mxu0 %v1042
    %1393 = vmatpush.bf16.msra.mxu0 %v1036
    %1394 = vmatpush.bf16.msra.mxu0 %v1030
    %1395 = vmatpush.bf16.msra.mxu0 %v1024
    %1396 = vmatpush.bf16.msra.mxu0 %v1018
    %1397 = vmatpush.bf16.msra.mxu0 %v1012
    %1398 = vmatpush.bf16.msra.mxu0 %v1006
    %1399 = vmatpush.bf16.msra.mxu0 %v1000
    %1400 = vmatmul.bf16.gmra.mxu0 %v273
    %v1401 = vpop.f32.mrf.mxu0
    %v1402 = vadd.f32 %v1388, %v1401
    %v1403 = vpop.f32.mrf.mxu0
    %v1404 = vadd.f32 %v1390, %v1403
    %1405 = vdwg.mxu0
    %1406 = vmatpush.bf16.msra.mxu0 %v899
    %1407 = vmatpush.bf16.msra.mxu0 %v893
    %1408 = vmatpush.bf16.msra.mxu0 %v887
    %1409 = vmatpush.bf16.msra.mxu0 %v881
    %1410 = vmatpush.bf16.msra.mxu0 %v875
    %1411 = vmatpush.bf16.msra.mxu0 %v869
    %1412 = vmatpush.bf16.msra.mxu0 %v863
    %1413 = vmatpush.bf16.msra.mxu0 %v857
    %1414 = vmatmul.bf16.gmra.mxu0 %v270
    %v1415 = vpop.f32.mrf.mxu0
    %v1416 = vadd.f32 0.0, %v1415
    %v1417 = vpop.f32.mrf.mxu0
    %v1418 = vadd.f32 0.0, %v1417
    %1419 = vdwg.mxu0
    %1420 = vmatpush.bf16.msra.mxu0 %v947
    %1421 = vmatpush.bf16.msra.mxu0 %v941
    %1422 = vmatpush.bf16.msra.mxu0 %v935
    %1423 = vmatpush.bf16.msra.mxu0 %v929
    %1424 = vmatpush.bf16.msra.mxu0 %v923
    %1425 = vmatpush.bf16.msra.mxu0 %v917
    %1426 = vmatpush.bf16.msra.mxu0 %v911
    %1427 = vmatpush.bf16.msra.mxu0 %v905
    %1428 = vmatmul.bf16.gmra.mxu0 %v271
    %v1429 = vpop.f32.mrf.mxu0
    %v1430 = vadd.f32 %v1416, %v1429
    %v1431 = vpop.f32.mrf.mxu0
    %v1432 = vadd.f32 %v1418, %v1431
    %1433 = vdwg.mxu0
    %1434 = vmatpush.bf16.msra.mxu0 %v995
    %1435 = vmatpush.bf16.msra.mxu0 %v989
    %1436 = vmatpush.bf16.msra.mxu0 %v983
    %1437 = vmatpush.bf16.msra.mxu0 %v977
    %1438 = vmatpush.bf16.msra.mxu0 %v971
    %1439 = vmatpush.bf16.msra.mxu0 %v965
    %1440 = vmatpush.bf16.msra.mxu0 %v959
    %1441 = vmatpush.bf16.msra.mxu0 %v953
    %1442 = vmatmul.bf16.gmra.mxu0 %v272
    %v1443 = vpop.f32.mrf.mxu0
    %v1444 = vadd.f32 %v1430, %v1443
    %v1445 = vpop.f32.mrf.mxu0
    %v1446 = vadd.f32 %v1432, %v1445
    %1447 = vdwg.mxu0
    %1448 = vmatpush.bf16.msra.mxu0 %v1043
    %1449 = vmatpush.bf16.msra.mxu0 %v1037
    %1450 = vmatpush.bf16.msra.mxu0 %v1031
    %1451 = vmatpush.bf16.msra.mxu0 %v1025
    %1452 = vmatpush.bf16.msra.mxu0 %v1019
    %1453 = vmatpush.bf16.msra.mxu0 %v1013
    %1454 = vmatpush.bf16.msra.mxu0 %v1007
    %1455 = vmatpush.bf16.msra.mxu0 %v1001
    %1456 = vmatmul.bf16.gmra.mxu0 %v273
    %v1457 = vpop.f32.mrf.mxu0
    %v1458 = vadd.f32 %v1444, %v1457
    %v1459 = vpop.f32.mrf.mxu0
    %v1460 = vadd.f32 %v1446, %v1459
    %1461 = vdwg.mxu0
    %1462 = vmatpush.bf16.msra.mxu0 %v900
    %1463 = vmatpush.bf16.msra.mxu0 %v894
    %1464 = vmatpush.bf16.msra.mxu0 %v888
    %1465 = vmatpush.bf16.msra.mxu0 %v882
    %1466 = vmatpush.bf16.msra.mxu0 %v876
    %1467 = vmatpush.bf16.msra.mxu0 %v870
    %1468 = vmatpush.bf16.msra.mxu0 %v864
    %1469 = vmatpush.bf16.msra.mxu0 %v858
    %1470 = vmatmul.bf16.gmra.mxu0 %v270
    %v1471 = vpop.f32.mrf.mxu0
    %v1472 = vadd.f32 0.0, %v1471
    %v1473 = vpop.f32.mrf.mxu0
    %v1474 = vadd.f32 0.0, %v1473
    %1475 = vdwg.mxu0
    %1476 = vmatpush.bf16.msra.mxu0 %v948
    %1477 = vmatpush.bf16.msra.mxu0 %v942
    %1478 = vmatpush.bf16.msra.mxu0 %v936
    %1479 = vmatpush.bf16.msra.mxu0 %v930
    %1480 = vmatpush.bf16.msra.mxu0 %v924
    %1481 = vmatpush.bf16.msra.mxu0 %v918
    %1482 = vmatpush.bf16.msra.mxu0 %v912
    %1483 = vmatpush.bf16.msra.mxu0 %v906
    %1484 = vmatmul.bf16.gmra.mxu0 %v271
    %v1485 = vpop.f32.mrf.mxu0
    %v1486 = vadd.f32 %v1472, %v1485
    %v1487 = vpop.f32.mrf.mxu0
    %v1488 = vadd.f32 %v1474, %v1487
    %1489 = vdwg.mxu0
    %1490 = vmatpush.bf16.msra.mxu0 %v996
    %1491 = vmatpush.bf16.msra.mxu0 %v990
    %1492 = vmatpush.bf16.msra.mxu0 %v984
    %1493 = vmatpush.bf16.msra.mxu0 %v978
    %1494 = vmatpush.bf16.msra.mxu0 %v972
    %1495 = vmatpush.bf16.msra.mxu0 %v966
    %1496 = vmatpush.bf16.msra.mxu0 %v960
    %1497 = vmatpush.bf16.msra.mxu0 %v954
    %1498 = vmatmul.bf16.gmra.mxu0 %v272
    %v1499 = vpop.f32.mrf.mxu0
    %v1500 = vadd.f32 %v1486, %v1499
    %v1501 = vpop.f32.mrf.mxu0
    %v1502 = vadd.f32 %v1488, %v1501
    %1503 = vdwg.mxu0
    %1504 = vmatpush.bf16.msra.mxu0 %v1044
    %1505 = vmatpush.bf16.msra.mxu0 %v1038
    %1506 = vmatpush.bf16.msra.mxu0 %v1032
    %1507 = vmatpush.bf16.msra.mxu0 %v1026
    %1508 = vmatpush.bf16.msra.mxu0 %v1020
    %1509 = vmatpush.bf16.msra.mxu0 %v1014
    %1510 = vmatpush.bf16.msra.mxu0 %v1008
    %1511 = vmatpush.bf16.msra.mxu0 %v1002
    %1512 = vmatmul.bf16.gmra.mxu0 %v273
    %v1513 = vpop.f32.mrf.mxu0
    %v1514 = vadd.f32 %v1500, %v1513
    %v1515 = vpop.f32.mrf.mxu0
    %v1516 = vadd.f32 %v1502, %v1515
    %1517 = vdwg.mxu0
    %1518 = vmatpush.bf16.msra.mxu0 %v901
    %1519 = vmatpush.bf16.msra.mxu0 %v895
    %1520 = vmatpush.bf16.msra.mxu0 %v889
    %1521 = vmatpush.bf16.msra.mxu0 %v883
    %1522 = vmatpush.bf16.msra.mxu0 %v877
    %1523 = vmatpush.bf16.msra.mxu0 %v871
    %1524 = vmatpush.bf16.msra.mxu0 %v865
    %1525 = vmatpush.bf16.msra.mxu0 %v859
    %1526 = vmatmul.bf16.gmra.mxu0 %v270
    %v1527 = vpop.f32.mrf.mxu0
    %v1528 = vadd.f32 0.0, %v1527
    %v1529 = vpop.f32.mrf.mxu0
    %v1530 = vadd.f32 0.0, %v1529
    %1531 = vdwg.mxu0
    %1532 = vmatpush.bf16.msra.mxu0 %v949
    %1533 = vmatpush.bf16.msra.mxu0 %v943
    %1534 = vmatpush.bf16.msra.mxu0 %v937
    %1535 = vmatpush.bf16.msra.mxu0 %v931
    %1536 = vmatpush.bf16.msra.mxu0 %v925
    %1537 = vmatpush.bf16.msra.mxu0 %v919
    %1538 = vmatpush.bf16.msra.mxu0 %v913
    %1539 = vmatpush.bf16.msra.mxu0 %v907
    %1540 = vmatmul.bf16.gmra.mxu0 %v271
    %v1541 = vpop.f32.mrf.mxu0
    %v1542 = vadd.f32 %v1528, %v1541
    %v1543 = vpop.f32.mrf.mxu0
    %v1544 = vadd.f32 %v1530, %v1543
    %1545 = vdwg.mxu0
    %1546 = vmatpush.bf16.msra.mxu0 %v997
    %1547 = vmatpush.bf16.msra.mxu0 %v991
    %1548 = vmatpush.bf16.msra.mxu0 %v985
    %1549 = vmatpush.bf16.msra.mxu0 %v979
    %1550 = vmatpush.bf16.msra.mxu0 %v973
    %1551 = vmatpush.bf16.msra.mxu0 %v967
    %1552 = vmatpush.bf16.msra.mxu0 %v961
    %1553 = vmatpush.bf16.msra.mxu0 %v955
    %1554 = vmatmul.bf16.gmra.mxu0 %v272
    %v1555 = vpop.f32.mrf.mxu0
    %v1556 = vadd.f32 %v1542, %v1555
    %v1557 = vpop.f32.mrf.mxu0
    %v1558 = vadd.f32 %v1544, %v1557
    %1559 = vdwg.mxu0
    %1560 = vmatpush.bf16.msra.mxu0 %v1045
    %1561 = vmatpush.bf16.msra.mxu0 %v1039
    %1562 = vmatpush.bf16.msra.mxu0 %v1033
    %1563 = vmatpush.bf16.msra.mxu0 %v1027
    %1564 = vmatpush.bf16.msra.mxu0 %v1021
    %1565 = vmatpush.bf16.msra.mxu0 %v1015
    %1566 = vmatpush.bf16.msra.mxu0 %v1009
    %1567 = vmatpush.bf16.msra.mxu0 %v1003
    %1568 = vmatmul.bf16.gmra.mxu0 %v273
    %v1569 = vpop.f32.mrf.mxu0
    %v1570 = vadd.f32 %v1556, %v1569
    %v1571 = vpop.f32.mrf.mxu0
    %v1572 = vadd.f32 %v1558, %v1571
    %1573 = vdwg.mxu0
    %v1574 = vmul.f32 %v1290, 0.5
    %v1575 = vmul.f32 %v1346, 0.5
    %v1576 = vmul.f32 %v1402, 0.5
    %v1577 = vmul.f32 %v1458, 0.5
    %v1578 = vmul.f32 %v1514, 0.5
    %v1579 = vmul.f32 %v1570, 0.5
    %v1580 = vmul.f32 %v1292, 0.5
    %v1581 = vmul.f32 %v1348, 0.5
    %v1582 = vmul.f32 %v1404, 0.5
    %v1583 = vmul.f32 %v1460, 0.5
    %v1584 = vmul.f32 %v1516, 0.5
    %v1585 = vmul.f32 %v1572, 0.5
    %v1586 = vadd.f32 %v1574, 0.5
    %v1587 = vadd.f32 %v1575, 0.5
    %v1588 = vadd.f32 %v1576, 0.5
    %v1589 = vadd.f32 %v1577, 0.5
    %v1590 = vadd.f32 %v1578, 0.5
    %v1591 = vadd.f32 %v1579, 0.5
    %v1592 = vadd.f32 %v1580, 0.5
    %v1593 = vadd.f32 %v1581, 0.5
    %v1594 = vadd.f32 %v1582, 0.5
    %v1595 = vadd.f32 %v1583, 0.5
    %v1596 = vadd.f32 %v1584, 0.5
    %v1597 = vadd.f32 %v1585, 0.5
    %v1598 = vmax.f32 %v1586, 0.0
    %v1599 = vmax.f32 %v1587, 0.0
    %v1600 = vmax.f32 %v1588, 0.0
    %v1601 = vmax.f32 %v1589, 0.0
    %v1602 = vmax.f32 %v1590, 0.0
    %v1603 = vmax.f32 %v1591, 0.0
    %v1604 = vmax.f32 %v1592, 0.0
    %v1605 = vmax.f32 %v1593, 0.0
    %v1606 = vmax.f32 %v1594, 0.0
    %v1607 = vmax.f32 %v1595, 0.0
    %v1608 = vmax.f32 %v1596, 0.0
    %v1609 = vmax.f32 %v1597, 0.0
    %v1610 = vmin.f32 %v1598, 1.0
    %v1611 = vmin.f32 %v1599, 1.0
    %v1612 = vmin.f32 %v1600, 1.0
    %v1613 = vmin.f32 %v1601, 1.0
    %v1614 = vmin.f32 %v1602, 1.0
    %v1615 = vmin.f32 %v1603, 1.0
    %v1616 = vmin.f32 %v1604, 1.0
    %v1617 = vmin.f32 %v1605, 1.0
    %v1618 = vmin.f32 %v1606, 1.0
    %v1619 = vmin.f32 %v1607, 1.0
    %v1620 = vmin.f32 %v1608, 1.0
    %v1621 = vmin.f32 %v1609, 1.0
    %v1622 = vpack.c.bf16 %v1616, %v1610
    %v1623 = vpack.c.bf16 %v1617, %v1611
    %v1624 = vpack.c.bf16 %v1618, %v1612
    %v1625 = vpack.c.bf16 %v1619, %v1613
    %v1626 = vpack.c.bf16 %v1620, %v1614
    %v1627 = vpack.c.bf16 %v1621, %v1615
    %v1628 = vld [vmem:[#allocation7] sm:$0xff]
    %v1629 = vld [vmem:[#allocation7 + $0x8] sm:$0xff]
    %v1630 = vld [vmem:[#allocation7 + $0x10] sm:$0xff]
    %v1631 = vld [vmem:[#allocation7 + $0x18] sm:$0xff]
    %v1632 = vld [vmem:[#allocation7 + $0x20] sm:$0xff]
    %v1633 = vld [vmem:[#allocation7 + $0x28] sm:$0xff]
    %v1634 = vld [vmem:[#allocation7 + $0x30] sm:$0xff]
    %v1635 = vld [vmem:[#allocation7 + $0x38] sm:$0xff]
    %v1636 = vld [vmem:[#allocation7 + $0x40] sm:$0xff]
    %v1637 = vld [vmem:[#allocation7 + $0x48] sm:$0xff]
    %v1638 = vld [vmem:[#allocation7 + $0x50] sm:$0xff]
    %v1639 = vld [vmem:[#allocation7 + $0x58] sm:$0xff]
    %v1640 = vld [vmem:[#allocation7 + $0x60] sm:$0xff]
    %v1641 = vld [vmem:[#allocation7 + $0x68] sm:$0xff]
    %v1642 = vld [vmem:[#allocation7 + $0x70] sm:$0xff]
    %v1643 = vld [vmem:[#allocation7 + $0x78] sm:$0xff]
    %v1644 = vld [vmem:[#allocation7 + $0x80] sm:$0xff]
    %v1645 = vld [vmem:[#allocation7 + $0x88] sm:$0xff]
    %v1646 = vld [vmem:[#allocation7 + $0x90] sm:$0xff]
    %v1647 = vld [vmem:[#allocation7 + $0x98] sm:$0xff]
    %v1648 = vld [vmem:[#allocation7 + $0xa0] sm:$0xff]
    %v1649 = vld [vmem:[#allocation7 + $0xa8] sm:$0xff]
    %v1650 = vld [vmem:[#allocation7 + $0xb0] sm:$0xff]
    %v1651 = vld [vmem:[#allocation7 + $0xb8] sm:$0xff]
    %v1652 = vld [vmem:[#allocation7 + $0xc0] sm:$0xff]
    %v1653 = vld [vmem:[#allocation7 + $0xc8] sm:$0xff]
    %v1654 = vld [vmem:[#allocation7 + $0xd0] sm:$0xff]
    %v1655 = vld [vmem:[#allocation7 + $0xd8] sm:$0xff]
    %v1656 = vld [vmem:[#allocation7 + $0xe0] sm:$0xff]
    %v1657 = vld [vmem:[#allocation7 + $0xe8] sm:$0xff]
    %v1658 = vld [vmem:[#allocation7 + $0xf0] sm:$0xff]
    %v1659 = vld [vmem:[#allocation7 + $0xf8] sm:$0xff]
    %v1660 = vld [vmem:[#allocation7 + $0x100] sm:$0xff]
    %v1661 = vld [vmem:[#allocation7 + $0x108] sm:$0xff]
    %v1662 = vld [vmem:[#allocation7 + $0x110] sm:$0xff]
    %v1663 = vld [vmem:[#allocation7 + $0x118] sm:$0xff]
    %v1664 = vld [vmem:[#allocation7 + $0x120] sm:$0xff]
    %v1665 = vld [vmem:[#allocation7 + $0x128] sm:$0xff]
    %v1666 = vld [vmem:[#allocation7 + $0x130] sm:$0xff]
    %v1667 = vld [vmem:[#allocation7 + $0x138] sm:$0xff]
    %v1668 = vld [vmem:[#allocation7 + $0x140] sm:$0xff]
    %v1669 = vld [vmem:[#allocation7 + $0x148] sm:$0xff]
    %v1670 = vld [vmem:[#allocation7 + $0x150] sm:$0xff]
    %v1671 = vld [vmem:[#allocation7 + $0x158] sm:$0xff]
    %v1672 = vld [vmem:[#allocation7 + $0x160] sm:$0xff]
    %v1673 = vld [vmem:[#allocation7 + $0x168] sm:$0xff]
    %v1674 = vld [vmem:[#allocation7 + $0x170] sm:$0xff]
    %v1675 = vld [vmem:[#allocation7 + $0x178] sm:$0xff]
    %v1676 = vld [vmem:[#allocation7 + $0x180] sm:$0xff]
    %v1677 = vld [vmem:[#allocation7 + $0x188] sm:$0xff]
    %v1678 = vld [vmem:[#allocation7 + $0x190] sm:$0xff]
    %v1679 = vld [vmem:[#allocation7 + $0x198] sm:$0xff]
    %v1680 = vld [vmem:[#allocation7 + $0x1a0] sm:$0xff]
    %v1681 = vld [vmem:[#allocation7 + $0x1a8] sm:$0xff]
    %v1682 = vld [vmem:[#allocation7 + $0x1b0] sm:$0xff]
    %v1683 = vld [vmem:[#allocation7 + $0x1b8] sm:$0xff]
    %v1684 = vld [vmem:[#allocation7 + $0x1c0] sm:$0xff]
    %v1685 = vld [vmem:[#allocation7 + $0x1c8] sm:$0xff]
    %v1686 = vld [vmem:[#allocation7 + $0x1d0] sm:$0xff]
    %v1687 = vld [vmem:[#allocation7 + $0x1d8] sm:$0xff]
    %v1688 = vld [vmem:[#allocation7 + $0x1e0] sm:$0xff]
    %v1689 = vld [vmem:[#allocation7 + $0x1e8] sm:$0xff]
    %v1690 = vld [vmem:[#allocation7 + $0x1f0] sm:$0xff]
    %v1691 = vld [vmem:[#allocation7 + $0x1f8] sm:$0xff]
    %v1692 = vld [vmem:[#allocation7 + $0x200] sm:$0xff]
    %v1693 = vld [vmem:[#allocation7 + $0x208] sm:$0xff]
    %v1694 = vld [vmem:[#allocation7 + $0x210] sm:$0xff]
    %v1695 = vld [vmem:[#allocation7 + $0x218] sm:$0xff]
    %v1696 = vld [vmem:[#allocation7 + $0x220] sm:$0xff]
    %v1697 = vld [vmem:[#allocation7 + $0x228] sm:$0xff]
    %v1698 = vld [vmem:[#allocation7 + $0x230] sm:$0xff]
    %v1699 = vld [vmem:[#allocation7 + $0x238] sm:$0xff]
    %v1700 = vld [vmem:[#allocation7 + $0x240] sm:$0xff]
    %v1701 = vld [vmem:[#allocation7 + $0x248] sm:$0xff]
    %v1702 = vld [vmem:[#allocation7 + $0x250] sm:$0xff]
    %v1703 = vld [vmem:[#allocation7 + $0x258] sm:$0xff]
    %v1704 = vld [vmem:[#allocation7 + $0x260] sm:$0xff]
    %v1705 = vld [vmem:[#allocation7 + $0x268] sm:$0xff]
    %v1706 = vld [vmem:[#allocation7 + $0x270] sm:$0xff]
    %v1707 = vld [vmem:[#allocation7 + $0x278] sm:$0xff]
    %v1708 = vld [vmem:[#allocation7 + $0x280] sm:$0xff]
    %v1709 = vld [vmem:[#allocation7 + $0x288] sm:$0xff]
    %v1710 = vld [vmem:[#allocation7 + $0x290] sm:$0xff]
    %v1711 = vld [vmem:[#allocation7 + $0x298] sm:$0xff]
    %v1712 = vld [vmem:[#allocation7 + $0x2a0] sm:$0xff]
    %v1713 = vld [vmem:[#allocation7 + $0x2a8] sm:$0xff]
    %v1714 = vld [vmem:[#allocation7 + $0x2b0] sm:$0xff]
    %v1715 = vld [vmem:[#allocation7 + $0x2b8] sm:$0xff]
    %v1716 = vld [vmem:[#allocation7 + $0x2c0] sm:$0xff]
    %v1717 = vld [vmem:[#allocation7 + $0x2c8] sm:$0xff]
    %v1718 = vld [vmem:[#allocation7 + $0x2d0] sm:$0xff]
    %v1719 = vld [vmem:[#allocation7 + $0x2d8] sm:$0xff]
    %v1720 = vld [vmem:[#allocation7 + $0x2e0] sm:$0xff]
    %v1721 = vld [vmem:[#allocation7 + $0x2e8] sm:$0xff]
    %v1722 = vld [vmem:[#allocation7 + $0x2f0] sm:$0xff]
    %v1723 = vld [vmem:[#allocation7 + $0x2f8] sm:$0xff]
    %v1820 = vunpack.c.l.b16 %v1628
    %v1821 = vunpack.c.h.b16 %v1628
    %v1822 = vunpack.c.l.b16 %v1629
    %v1823 = vunpack.c.h.b16 %v1629
    %v1824 = vunpack.c.l.b16 %v1630
    %v1825 = vunpack.c.h.b16 %v1630
    %v1826 = vunpack.c.l.b16 %v1631
    %v1827 = vunpack.c.h.b16 %v1631
    %v1828 = vunpack.c.l.b16 %v1632
    %v1829 = vunpack.c.h.b16 %v1632
    %v1830 = vunpack.c.l.b16 %v1633
    %v1831 = vunpack.c.h.b16 %v1633
    %v1832 = vunpack.c.l.b16 %v1634
    %v1833 = vunpack.c.h.b16 %v1634
    %v1834 = vunpack.c.l.b16 %v1635
    %v1835 = vunpack.c.h.b16 %v1635
    %v1836 = vunpack.c.l.b16 %v1636
    %v1837 = vunpack.c.h.b16 %v1636
    %v1838 = vunpack.c.l.b16 %v1637
    %v1839 = vunpack.c.h.b16 %v1637
    %v1840 = vunpack.c.l.b16 %v1638
    %v1841 = vunpack.c.h.b16 %v1638
    %v1842 = vunpack.c.l.b16 %v1639
    %v1843 = vunpack.c.h.b16 %v1639
    %v1844 = vunpack.c.l.b16 %v1640
    %v1845 = vunpack.c.h.b16 %v1640
    %v1846 = vunpack.c.l.b16 %v1641
    %v1847 = vunpack.c.h.b16 %v1641
    %v1848 = vunpack.c.l.b16 %v1642
    %v1849 = vunpack.c.h.b16 %v1642
    %v1850 = vunpack.c.l.b16 %v1643
    %v1851 = vunpack.c.h.b16 %v1643
    %v1852 = vunpack.c.l.b16 %v1644
    %v1853 = vunpack.c.h.b16 %v1644
    %v1854 = vunpack.c.l.b16 %v1645
    %v1855 = vunpack.c.h.b16 %v1645
    %v1856 = vunpack.c.l.b16 %v1646
    %v1857 = vunpack.c.h.b16 %v1646
    %v1858 = vunpack.c.l.b16 %v1647
    %v1859 = vunpack.c.h.b16 %v1647
    %v1860 = vunpack.c.l.b16 %v1648
    %v1861 = vunpack.c.h.b16 %v1648
    %v1862 = vunpack.c.l.b16 %v1649
    %v1863 = vunpack.c.h.b16 %v1649
    %v1864 = vunpack.c.l.b16 %v1650
    %v1865 = vunpack.c.h.b16 %v1650
    %v1866 = vunpack.c.l.b16 %v1651
    %v1867 = vunpack.c.h.b16 %v1651
    %v1868 = vunpack.c.l.b16 %v1652
    %v1869 = vunpack.c.h.b16 %v1652
    %v1870 = vunpack.c.l.b16 %v1653
    %v1871 = vunpack.c.h.b16 %v1653
    %v1872 = vunpack.c.l.b16 %v1654
    %v1873 = vunpack.c.h.b16 %v1654
    %v1874 = vunpack.c.l.b16 %v1655
    %v1875 = vunpack.c.h.b16 %v1655
    %v1876 = vunpack.c.l.b16 %v1656
    %v1877 = vunpack.c.h.b16 %v1656
    %v1878 = vunpack.c.l.b16 %v1657
    %v1879 = vunpack.c.h.b16 %v1657
    %v1880 = vunpack.c.l.b16 %v1658
    %v1881 = vunpack.c.h.b16 %v1658
    %v1882 = vunpack.c.l.b16 %v1659
    %v1883 = vunpack.c.h.b16 %v1659
    %v1884 = vunpack.c.l.b16 %v1660
    %v1885 = vunpack.c.h.b16 %v1660
    %v1886 = vunpack.c.l.b16 %v1661
    %v1887 = vunpack.c.h.b16 %v1661
    %v1888 = vunpack.c.l.b16 %v1662
    %v1889 = vunpack.c.h.b16 %v1662
    %v1890 = vunpack.c.l.b16 %v1663
    %v1891 = vunpack.c.h.b16 %v1663
    %v1892 = vunpack.c.l.b16 %v1664
    %v1893 = vunpack.c.h.b16 %v1664
    %v1894 = vunpack.c.l.b16 %v1665
    %v1895 = vunpack.c.h.b16 %v1665
    %v1896 = vunpack.c.l.b16 %v1666
    %v1897 = vunpack.c.h.b16 %v1666
    %v1898 = vunpack.c.l.b16 %v1667
    %v1899 = vunpack.c.h.b16 %v1667
    %v1900 = vunpack.c.l.b16 %v1668
    %v1901 = vunpack.c.h.b16 %v1668
    %v1902 = vunpack.c.l.b16 %v1669
    %v1903 = vunpack.c.h.b16 %v1669
    %v1904 = vunpack.c.l.b16 %v1670
    %v1905 = vunpack.c.h.b16 %v1670
    %v1906 = vunpack.c.l.b16 %v1671
    %v1907 = vunpack.c.h.b16 %v1671
    %v1908 = vunpack.c.l.b16 %v1672
    %v1909 = vunpack.c.h.b16 %v1672
    %v1910 = vunpack.c.l.b16 %v1673
    %v1911 = vunpack.c.h.b16 %v1673
    %v1912 = vunpack.c.l.b16 %v1674
    %v1913 = vunpack.c.h.b16 %v1674
    %v1914 = vunpack.c.l.b16 %v1675
    %v1915 = vunpack.c.h.b16 %v1675
    %v1916 = vunpack.c.l.b16 %v1676
    %v1917 = vunpack.c.h.b16 %v1676
    %v1918 = vunpack.c.l.b16 %v1677
    %v1919 = vunpack.c.h.b16 %v1677
    %v1920 = vunpack.c.l.b16 %v1678
    %v1921 = vunpack.c.h.b16 %v1678
    %v1922 = vunpack.c.l.b16 %v1679
    %v1923 = vunpack.c.h.b16 %v1679
    %v1924 = vunpack.c.l.b16 %v1680
    %v1925 = vunpack.c.h.b16 %v1680
    %v1926 = vunpack.c.l.b16 %v1681
    %v1927 = vunpack.c.h.b16 %v1681
    %v1928 = vunpack.c.l.b16 %v1682
    %v1929 = vunpack.c.h.b16 %v1682
    %v1930 = vunpack.c.l.b16 %v1683
    %v1931 = vunpack.c.h.b16 %v1683
    %v1932 = vunpack.c.l.b16 %v1684
    %v1933 = vunpack.c.h.b16 %v1684
    %v1934 = vunpack.c.l.b16 %v1685
    %v1935 = vunpack.c.h.b16 %v1685
    %v1936 = vunpack.c.l.b16 %v1686
    %v1937 = vunpack.c.h.b16 %v1686
    %v1938 = vunpack.c.l.b16 %v1687
    %v1939 = vunpack.c.h.b16 %v1687
    %v1940 = vunpack.c.l.b16 %v1688
    %v1941 = vunpack.c.h.b16 %v1688
    %v1942 = vunpack.c.l.b16 %v1689
    %v1943 = vunpack.c.h.b16 %v1689
    %v1944 = vunpack.c.l.b16 %v1690
    %v1945 = vunpack.c.h.b16 %v1690
    %v1946 = vunpack.c.l.b16 %v1691
    %v1947 = vunpack.c.h.b16 %v1691
    %v1948 = vunpack.c.l.b16 %v1692
    %v1949 = vunpack.c.h.b16 %v1692
    %v1950 = vunpack.c.l.b16 %v1693
    %v1951 = vunpack.c.h.b16 %v1693
    %v1952 = vunpack.c.l.b16 %v1694
    %v1953 = vunpack.c.h.b16 %v1694
    %v1954 = vunpack.c.l.b16 %v1695
    %v1955 = vunpack.c.h.b16 %v1695
    %v1956 = vunpack.c.l.b16 %v1696
    %v1957 = vunpack.c.h.b16 %v1696
    %v1958 = vunpack.c.l.b16 %v1697
    %v1959 = vunpack.c.h.b16 %v1697
    %v1960 = vunpack.c.l.b16 %v1698
    %v1961 = vunpack.c.h.b16 %v1698
    %v1962 = vunpack.c.l.b16 %v1699
    %v1963 = vunpack.c.h.b16 %v1699
    %v1964 = vunpack.c.l.b16 %v1700
    %v1965 = vunpack.c.h.b16 %v1700
    %v1966 = vunpack.c.l.b16 %v1701
    %v1967 = vunpack.c.h.b16 %v1701
    %v1968 = vunpack.c.l.b16 %v1702
    %v1969 = vunpack.c.h.b16 %v1702
    %v1970 = vunpack.c.l.b16 %v1703
    %v1971 = vunpack.c.h.b16 %v1703
    %v1972 = vunpack.c.l.b16 %v1704
    %v1973 = vunpack.c.h.b16 %v1704
    %v1974 = vunpack.c.l.b16 %v1705
    %v1975 = vunpack.c.h.b16 %v1705
    %v1976 = vunpack.c.l.b16 %v1706
    %v1977 = vunpack.c.h.b16 %v1706
    %v1978 = vunpack.c.l.b16 %v1707
    %v1979 = vunpack.c.h.b16 %v1707
    %v1980 = vunpack.c.l.b16 %v1708
    %v1981 = vunpack.c.h.b16 %v1708
    %v1982 = vunpack.c.l.b16 %v1709
    %v1983 = vunpack.c.h.b16 %v1709
    %v1984 = vunpack.c.l.b16 %v1710
    %v1985 = vunpack.c.h.b16 %v1710
    %v1986 = vunpack.c.l.b16 %v1711
    %v1987 = vunpack.c.h.b16 %v1711
    %v1988 = vunpack.c.l.b16 %v1712
    %v1989 = vunpack.c.h.b16 %v1712
    %v1990 = vunpack.c.l.b16 %v1713
    %v1991 = vunpack.c.h.b16 %v1713
    %v1992 = vunpack.c.l.b16 %v1714
    %v1993 = vunpack.c.h.b16 %v1714
    %v1994 = vunpack.c.l.b16 %v1715
    %v1995 = vunpack.c.h.b16 %v1715
    %v1996 = vunpack.c.l.b16 %v1716
    %v1997 = vunpack.c.h.b16 %v1716
    %v1998 = vunpack.c.l.b16 %v1717
    %v1999 = vunpack.c.h.b16 %v1717
    %v2000 = vunpack.c.l.b16 %v1718
    %v2001 = vunpack.c.h.b16 %v1718
    %v2002 = vunpack.c.l.b16 %v1719
    %v2003 = vunpack.c.h.b16 %v1719
    %v2004 = vunpack.c.l.b16 %v1720
    %v2005 = vunpack.c.h.b16 %v1720
    %v2006 = vunpack.c.l.b16 %v1721
    %v2007 = vunpack.c.h.b16 %v1721
    %v2008 = vunpack.c.l.b16 %v1722
    %v2009 = vunpack.c.h.b16 %v1722
    %v2010 = vunpack.c.l.b16 %v1723
    %v2011 = vunpack.c.h.b16 %v1723
    %v2012 = vpack.c.b16 %v1822, %v1820
    %v2013 = vpack.c.b16 %v1823, %v1821
    %v2014 = vpack.c.b16 %v1826, %v1824
    %v2015 = vpack.c.b16 %v1827, %v1825
    %v2016 = vpack.c.b16 %v1830, %v1828
    %v2017 = vpack.c.b16 %v1831, %v1829
    %v2018 = vpack.c.b16 %v1834, %v1832
    %v2019 = vpack.c.b16 %v1835, %v1833
    %v2020 = vpack.c.b16 %v1838, %v1836
    %v2021 = vpack.c.b16 %v1839, %v1837
    %v2022 = vpack.c.b16 %v1842, %v1840
    %v2023 = vpack.c.b16 %v1843, %v1841
    %v2024 = vpack.c.b16 %v1846, %v1844
    %v2025 = vpack.c.b16 %v1847, %v1845
    %v2026 = vpack.c.b16 %v1850, %v1848
    %v2027 = vpack.c.b16 %v1851, %v1849
    %v2028 = vpack.c.b16 %v1854, %v1852
    %v2029 = vpack.c.b16 %v1855, %v1853
    %v2030 = vpack.c.b16 %v1858, %v1856
    %v2031 = vpack.c.b16 %v1859, %v1857
    %v2032 = vpack.c.b16 %v1862, %v1860
    %v2033 = vpack.c.b16 %v1863, %v1861
    %v2034 = vpack.c.b16 %v1866, %v1864
    %v2035 = vpack.c.b16 %v1867, %v1865
    %v2036 = vpack.c.b16 %v1870, %v1868
    %v2037 = vpack.c.b16 %v1871, %v1869
    %v2038 = vpack.c.b16 %v1874, %v1872
    %v2039 = vpack.c.b16 %v1875, %v1873
    %v2040 = vpack.c.b16 %v1878, %v1876
    %v2041 = vpack.c.b16 %v1879, %v1877
    %v2042 = vpack.c.b16 %v1882, %v1880
    %v2043 = vpack.c.b16 %v1883, %v1881
    %v2044 = vpack.c.b16 %v1886, %v1884
    %v2045 = vpack.c.b16 %v1887, %v1885
    %v2046 = vpack.c.b16 %v1890, %v1888
    %v2047 = vpack.c.b16 %v1891, %v1889
    %v2048 = vpack.c.b16 %v1894, %v1892
    %v2049 = vpack.c.b16 %v1895, %v1893
    %v2050 = vpack.c.b16 %v1898, %v1896
    %v2051 = vpack.c.b16 %v1899, %v1897
    %v2052 = vpack.c.b16 %v1902, %v1900
    %v2053 = vpack.c.b16 %v1903, %v1901
    %v2054 = vpack.c.b16 %v1906, %v1904
    %v2055 = vpack.c.b16 %v1907, %v1905
    %v2056 = vpack.c.b16 %v1910, %v1908
    %v2057 = vpack.c.b16 %v1911, %v1909
    %v2058 = vpack.c.b16 %v1914, %v1912
    %v2059 = vpack.c.b16 %v1915, %v1913
    %v2060 = vpack.c.b16 %v1918, %v1916
    %v2061 = vpack.c.b16 %v1919, %v1917
    %v2062 = vpack.c.b16 %v1922, %v1920
    %v2063 = vpack.c.b16 %v1923, %v1921
    %v2064 = vpack.c.b16 %v1926, %v1924
    %v2065 = vpack.c.b16 %v1927, %v1925
    %v2066 = vpack.c.b16 %v1930, %v1928
    %v2067 = vpack.c.b16 %v1931, %v1929
    %v2068 = vpack.c.b16 %v1934, %v1932
    %v2069 = vpack.c.b16 %v1935, %v1933
    %v2070 = vpack.c.b16 %v1938, %v1936
    %v2071 = vpack.c.b16 %v1939, %v1937
    %v2072 = vpack.c.b16 %v1942, %v1940
    %v2073 = vpack.c.b16 %v1943, %v1941
    %v2074 = vpack.c.b16 %v1946, %v1944
    %v2075 = vpack.c.b16 %v1947, %v1945
    %v2076 = vpack.c.b16 %v1950, %v1948
    %v2077 = vpack.c.b16 %v1951, %v1949
    %v2078 = vpack.c.b16 %v1954, %v1952
    %v2079 = vpack.c.b16 %v1955, %v1953
    %v2080 = vpack.c.b16 %v1958, %v1956
    %v2081 = vpack.c.b16 %v1959, %v1957
    %v2082 = vpack.c.b16 %v1962, %v1960
    %v2083 = vpack.c.b16 %v1963, %v1961
    %v2084 = vpack.c.b16 %v1966, %v1964
    %v2085 = vpack.c.b16 %v1967, %v1965
    %v2086 = vpack.c.b16 %v1970, %v1968
    %v2087 = vpack.c.b16 %v1971, %v1969
    %v2088 = vpack.c.b16 %v1974, %v1972
    %v2089 = vpack.c.b16 %v1975, %v1973
    %v2090 = vpack.c.b16 %v1978, %v1976
    %v2091 = vpack.c.b16 %v1979, %v1977
    %v2092 = vpack.c.b16 %v1982, %v1980
    %v2093 = vpack.c.b16 %v1983, %v1981
    %v2094 = vpack.c.b16 %v1986, %v1984
    %v2095 = vpack.c.b16 %v1987, %v1985
    %v2096 = vpack.c.b16 %v1990, %v1988
    %v2097 = vpack.c.b16 %v1991, %v1989
    %v2098 = vpack.c.b16 %v1994, %v1992
    %v2099 = vpack.c.b16 %v1995, %v1993
    %v2100 = vpack.c.b16 %v1998, %v1996
    %v2101 = vpack.c.b16 %v1999, %v1997
    %v2102 = vpack.c.b16 %v2002, %v2000
    %v2103 = vpack.c.b16 %v2003, %v2001
    %v2104 = vpack.c.b16 %v2006, %v2004
    %v2105 = vpack.c.b16 %v2007, %v2005
    %v2106 = vpack.c.b16 %v2010, %v2008
    %v2107 = vpack.c.b16 %v2011, %v2009
    %2204 = vmatpush.bf16.msra.mxu0 %v2026
    %2205 = vmatpush.bf16.msra.mxu0 %v2024
    %2206 = vmatpush.bf16.msra.mxu0 %v2022
    %2207 = vmatpush.bf16.msra.mxu0 %v2020
    %2208 = vmatpush.bf16.msra.mxu0 %v2018
    %2209 = vmatpush.bf16.msra.mxu0 %v2016
    %2210 = vmatpush.bf16.msra.mxu0 %v2014
    %2211 = vmatpush.bf16.msra.mxu0 %v2012
    %2212 = vmatmul.bf16.gmra.mxu0 %v1622
    %v2213 = vpop.f32.mrf.mxu0
    %v2214 = vadd.f32 0.0, %v2213
    %v2215 = vpop.f32.mrf.mxu0
    %v2216 = vadd.f32 0.0, %v2215
    %2217 = vdwg.mxu0
    %2218 = vmatpush.bf16.msra.mxu0 %v2042
    %2219 = vmatpush.bf16.msra.mxu0 %v2040
    %2220 = vmatpush.bf16.msra.mxu0 %v2038
    %2221 = vmatpush.bf16.msra.mxu0 %v2036
    %2222 = vmatpush.bf16.msra.mxu0 %v2034
    %2223 = vmatpush.bf16.msra.mxu0 %v2032
    %2224 = vmatpush.bf16.msra.mxu0 %v2030
    %2225 = vmatpush.bf16.msra.mxu0 %v2028
    %2226 = vmatmul.bf16.gmra.mxu0 %v1623
    %v2227 = vpop.f32.mrf.mxu0
    %v2228 = vadd.f32 %v2214, %v2227
    %v2229 = vpop.f32.mrf.mxu0
    %v2230 = vadd.f32 %v2216, %v2229
    %2231 = vdwg.mxu0
    %2232 = vmatpush.bf16.msra.mxu0 %v2058
    %2233 = vmatpush.bf16.msra.mxu0 %v2056
    %2234 = vmatpush.bf16.msra.mxu0 %v2054
    %2235 = vmatpush.bf16.msra.mxu0 %v2052
    %2236 = vmatpush.bf16.msra.mxu0 %v2050
    %2237 = vmatpush.bf16.msra.mxu0 %v2048
    %2238 = vmatpush.bf16.msra.mxu0 %v2046
    %2239 = vmatpush.bf16.msra.mxu0 %v2044
    %2240 = vmatmul.bf16.gmra.mxu0 %v1624
    %v2241 = vpop.f32.mrf.mxu0
    %v2242 = vadd.f32 %v2228, %v2241
    %v2243 = vpop.f32.mrf.mxu0
    %v2244 = vadd.f32 %v2230, %v2243
    %2245 = vdwg.mxu0
    %2246 = vmatpush.bf16.msra.mxu0 %v2074
    %2247 = vmatpush.bf16.msra.mxu0 %v2072
    %2248 = vmatpush.bf16.msra.mxu0 %v2070
    %2249 = vmatpush.bf16.msra.mxu0 %v2068
    %2250 = vmatpush.bf16.msra.mxu0 %v2066
    %2251 = vmatpush.bf16.msra.mxu0 %v2064
    %2252 = vmatpush.bf16.msra.mxu0 %v2062
    %2253 = vmatpush.bf16.msra.mxu0 %v2060
    %2254 = vmatmul.bf16.gmra.mxu0 %v1625
    %v2255 = vpop.f32.mrf.mxu0
    %v2256 = vadd.f32 %v2242, %v2255
    %v2257 = vpop.f32.mrf.mxu0
    %v2258 = vadd.f32 %v2244, %v2257
    %2259 = vdwg.mxu0
    %2260 = vmatpush.bf16.msra.mxu0 %v2090
    %2261 = vmatpush.bf16.msra.mxu0 %v2088
    %2262 = vmatpush.bf16.msra.mxu0 %v2086
    %2263 = vmatpush.bf16.msra.mxu0 %v2084
    %2264 = vmatpush.bf16.msra.mxu0 %v2082
    %2265 = vmatpush.bf16.msra.mxu0 %v2080
    %2266 = vmatpush.bf16.msra.mxu0 %v2078
    %2267 = vmatpush.bf16.msra.mxu0 %v2076
    %2268 = vmatmul.bf16.gmra.mxu0 %v1626
    %v2269 = vpop.f32.mrf.mxu0
    %v2270 = vadd.f32 %v2256, %v2269
    %v2271 = vpop.f32.mrf.mxu0
    %v2272 = vadd.f32 %v2258, %v2271
    %2273 = vdwg.mxu0
    %2274 = vmatpush.bf16.msra.mxu0 %v2106
    %2275 = vmatpush.bf16.msra.mxu0 %v2104
    %2276 = vmatpush.bf16.msra.mxu0 %v2102
    %2277 = vmatpush.bf16.msra.mxu0 %v2100
    %2278 = vmatpush.bf16.msra.mxu0 %v2098
    %2279 = vmatpush.bf16.msra.mxu0 %v2096
    %2280 = vmatpush.bf16.msra.mxu0 %v2094
    %2281 = vmatpush.bf16.msra.mxu0 %v2092
    %2282 = vmatmul.bf16.gmra.mxu0 %v1627
    %v2283 = vpop.f32.mrf.mxu0
    %v2284 = vadd.f32 %v2270, %v2283
    %v2285 = vpop.f32.mrf.mxu0
    %v2286 = vadd.f32 %v2272, %v2285
    %2287 = vdwg.mxu0
    %2288 = vmatpush.bf16.msra.mxu0 %v2027
    %2289 = vmatpush.bf16.msra.mxu0 %v2025
    %2290 = vmatpush.bf16.msra.mxu0 %v2023
    %2291 = vmatpush.bf16.msra.mxu0 %v2021
    %2292 = vmatpush.bf16.msra.mxu0 %v2019
    %2293 = vmatpush.bf16.msra.mxu0 %v2017
    %2294 = vmatpush.bf16.msra.mxu0 %v2015
    %2295 = vmatpush.bf16.msra.mxu0 %v2013
    %2296 = vmatmul.bf16.gmra.mxu0 %v1622
    %v2297 = vpop.f32.mrf.mxu0
    %v2298 = vadd.f32 0.0, %v2297
    %v2299 = vpop.f32.mrf.mxu0
    %v2300 = vadd.f32 0.0, %v2299
    %2301 = vdwg.mxu0
    %2302 = vmatpush.bf16.msra.mxu0 %v2043
    %2303 = vmatpush.bf16.msra.mxu0 %v2041
    %2304 = vmatpush.bf16.msra.mxu0 %v2039
    %2305 = vmatpush.bf16.msra.mxu0 %v2037
    %2306 = vmatpush.bf16.msra.mxu0 %v2035
    %2307 = vmatpush.bf16.msra.mxu0 %v2033
    %2308 = vmatpush.bf16.msra.mxu0 %v2031
    %2309 = vmatpush.bf16.msra.mxu0 %v2029
    %2310 = vmatmul.bf16.gmra.mxu0 %v1623
    %v2311 = vpop.f32.mrf.mxu0
    %v2312 = vadd.f32 %v2298, %v2311
    %v2313 = vpop.f32.mrf.mxu0
    %v2314 = vadd.f32 %v2300, %v2313
    %2315 = vdwg.mxu0
    %2316 = vmatpush.bf16.msra.mxu0 %v2059
    %2317 = vmatpush.bf16.msra.mxu0 %v2057
    %2318 = vmatpush.bf16.msra.mxu0 %v2055
    %2319 = vmatpush.bf16.msra.mxu0 %v2053
    %2320 = vmatpush.bf16.msra.mxu0 %v2051
    %2321 = vmatpush.bf16.msra.mxu0 %v2049
    %2322 = vmatpush.bf16.msra.mxu0 %v2047
    %2323 = vmatpush.bf16.msra.mxu0 %v2045
    %2324 = vmatmul.bf16.gmra.mxu0 %v1624
    %v2325 = vpop.f32.mrf.mxu0
    %v2326 = vadd.f32 %v2312, %v2325
    %v2327 = vpop.f32.mrf.mxu0
    %v2328 = vadd.f32 %v2314, %v2327
    %2329 = vdwg.mxu0
    %2330 = vmatpush.bf16.msra.mxu0 %v2075
    %2331 = vmatpush.bf16.msra.mxu0 %v2073
    %2332 = vmatpush.bf16.msra.mxu0 %v2071
    %2333 = vmatpush.bf16.msra.mxu0 %v2069
    %2334 = vmatpush.bf16.msra.mxu0 %v2067
    %2335 = vmatpush.bf16.msra.mxu0 %v2065
    %2336 = vmatpush.bf16.msra.mxu0 %v2063
    %2337 = vmatpush.bf16.msra.mxu0 %v2061
    %2338 = vmatmul.bf16.gmra.mxu0 %v1625
    %v2339 = vpop.f32.mrf.mxu0
    %v2340 = vadd.f32 %v2326, %v2339
    %v2341 = vpop.f32.mrf.mxu0
    %v2342 = vadd.f32 %v2328, %v2341
    %2343 = vdwg.mxu0
    %2344 = vmatpush.bf16.msra.mxu0 %v2091
    %2345 = vmatpush.bf16.msra.mxu0 %v2089
    %2346 = vmatpush.bf16.msra.mxu0 %v2087
    %2347 = vmatpush.bf16.msra.mxu0 %v2085
    %2348 = vmatpush.bf16.msra.mxu0 %v2083
    %2349 = vmatpush.bf16.msra.mxu0 %v2081
    %2350 = vmatpush.bf16.msra.mxu0 %v2079
    %2351 = vmatpush.bf16.msra.mxu0 %v2077
    %2352 = vmatmul.bf16.gmra.mxu0 %v1626
    %v2353 = vpop.f32.mrf.mxu0
    %v2354 = vadd.f32 %v2340, %v2353
    %v2355 = vpop.f32.mrf.mxu0
    %v2356 = vadd.f32 %v2342, %v2355
    %2357 = vdwg.mxu0
    %2358 = vmatpush.bf16.msra.mxu0 %v2107
    %2359 = vmatpush.bf16.msra.mxu0 %v2105
    %2360 = vmatpush.bf16.msra.mxu0 %v2103
    %2361 = vmatpush.bf16.msra.mxu0 %v2101
    %2362 = vmatpush.bf16.msra.mxu0 %v2099
    %2363 = vmatpush.bf16.msra.mxu0 %v2097
    %2364 = vmatpush.bf16.msra.mxu0 %v2095
    %2365 = vmatpush.bf16.msra.mxu0 %v2093
    %2366 = vmatmul.bf16.gmra.mxu0 %v1627
    %v2367 = vpop.f32.mrf.mxu0
    %v2368 = vadd.f32 %v2354, %v2367
    %v2369 = vpop.f32.mrf.mxu0
    %v2370 = vadd.f32 %v2356, %v2369
    %2371 = vdwg.mxu0
    %v2372 = vmul.f32 %v2284, %v2284
    %v2373 = vmul.f32 %v2368, %v2368
    %v2374 = vmul.f32 %v2286, %v2286
    %v2375 = vmul.f32 %v2370, %v2370
    %v2376 = vadd.f32 %v2372, %v2373
    %2377 = vadd.xlane.f32.xlu0 %v2376
    %v2378 = vpop.xlane.xlu0 %2377
    %v2379 = vadd.f32 %v2374, %v2375
    %2380 = vadd.xlane.f32.xlu0 %v2379
    %v2381 = vpop.xlane.xlu0 %2380
    %v2382 = vrsqrt.pop %v2378
    %v2383 = vmul.f32 %v2382, %v2378
    %v2384 = vmul.f32 %v2383, %v2382
    %v2385 = vmul.f32 0.5, %v2384
    %v2386 = vsub.f32 1.5, %v2385
    %v2387 = vmul.f32 %v2382, %v2386
    %v2388 = vmul.f32 %v2378, %v2387
    %vm2389 = vcmp.eq.f32.partialorder %v2378, inf
    %v2390 = vsel %vm2389, %v2378, %v2388
    %vm2391 = vcmp.eq.f32.partialorder %v2378, 0.0
    %v2392 = vand.u32 %v2378, 2147483648
    %v2393 = vsel %vm2391, %v2392, %v2390
    %v2394 = vrsqrt.pop %v2381
    %v2395 = vmul.f32 %v2394, %v2381
    %v2396 = vmul.f32 %v2395, %v2394
    %v2397 = vmul.f32 0.5, %v2396
    %v2398 = vsub.f32 1.5, %v2397
    %v2399 = vmul.f32 %v2394, %v2398
    %v2400 = vmul.f32 %v2381, %v2399
    %vm2401 = vcmp.eq.f32.partialorder %v2381, inf
    %v2402 = vsel %vm2401, %v2381, %v2400
    %vm2403 = vcmp.eq.f32.partialorder %v2381, 0.0
    %v2404 = vand.u32 %v2381, 2147483648
    %v2405 = vsel %vm2403, %v2404, %v2402
    %v2406 = vadd.f32 %v2393, 1e-06
    %v2407 = vadd.f32 %v2405, 1e-06
    %v2408 = vrcp.pop %v2406
    %v2409 = vrcp.pop %v2407
    %v2410 = vmul.f32 %v2284, %v2408
    %v2411 = vmul.f32 %v2368, %v2408
    %v2412 = vmul.f32 %v2286, %v2409
    %v2413 = vmul.f32 %v2370, %v2409
    %v2414 = vmul.f32 %v2410, %v2412
    %v2415 = vmul.f32 %v2411, %v2413
    %vm2416 = vcmask 1043456
    %v2417 = vsel %vm2416, %v2414, 0.0
    %v2418 = vsel %vm2416, %v2415, 0.0
    %v2419 = vadd.f32 %v2417, %v2418
    %2420 = vadd.xlane.f32.xlu0 %v2419
    %v2421 = vpop.xlane.xlu0 %2420
    %v2422 = vsub.f32 1.0, %v2421
    %vm2423 = vcmask 1047556
    %v2424 = vsel %vm2423, %v2414, 0.0
    %v2425 = vsel %vm2423, %v2415, 0.0
    %v2426 = vadd.f32 %v2424, %v2425
    %2427 = vadd.xlane.f32.xlu0 %v2426
    %v2428 = vpop.xlane.xlu0 %2427
    %v2429 = vsub.f32 1.0, %v2428
    %v2432 = vrot.slane %v2412, 4
    %v2433 = vrot.slane %v2413, 4
    %v2436 = vmul.f32 %v2410, %v2432
    %v2437 = vmul.f32 %v2411, %v2433
    %v2438 = vsel %vm2416, %v2436, 0.0
    %v2439 = vsel %vm2416, %v2437, 0.0
    %v2440 = vadd.f32 %v2438, %v2439
    %2441 = vadd.xlane.f32.xlu0 %v2440
    %v2442 = vpop.xlane.xlu0 %2441
    %v2443 = vsub.f32 1.0, %v2442
    %v2444 = vsel %vm2423, %v2436, 0.0
    %v2445 = vsel %vm2423, %v2437, 0.0
    %v2446 = vadd.f32 %v2444, %v2445
    %2447 = vadd.xlane.f32.xlu0 %v2446
    %v2448 = vpop.xlane.xlu0 %2447
    %v2449 = vsub.f32 1.0, %v2448
    %v2451 = vrot.slane %v2429, 4
    %v2454 = vrot.slane %v2449, 4
    %vm2456 = vcmask 7168
    %v2457 = vsel %vm2456, %v2422, %v2451
    %vm2458 = vcmask 15360
    %v2459 = vsel %vm2458, %v2457, %v2443
    %vm2460 = vcmask 23552
    %v2461 = vsel %vm2460, %v2459, %v2454
    %vm2462 = vcmask 27648
    %2463 = vst.msk [vmem:[#allocation8] sm:$0xf] %vm2462, %v2461
    // Predicated region
    $region26: #{tpu_custom_call.1} parent=1 // pred_check
      _
    $region27: #{tpu_custom_call.1} parent=1 // pred_check_branch
      %2465 = sbr.rel (0) target = $region29
    $region28: #{tpu_custom_call.1} parent=1 // pred_region
      %2467 = vsyncadd [#allocation4], 0
      %s2469 = sshll.u32 [#allocation8], 4
      %s2470 = int_to_ptr.vmem [resolvable:$true] %s2469
      %s2471 = sshll.u32 %s3, 4
      %s2472 = int_to_ptr.hbm [resolvable:$true] %s2471
      %2474 = dma.vmem_to_hbm [thread:$0]  %s2470, 64, %s2472, [#allocation4]
    $region29: #{tpu_custom_call.1} parent=1 // pred_fallthru
      _
    // Predicated region
    $region30: #{tpu_custom_call.1} parent=1 // pred_check
      _
    $region31: #{tpu_custom_call.1} parent=1 // pred_check_branch
      %2476 = sbr.rel (0) target = $region33
    $region32: #{tpu_custom_call.1} parent=1 // pred_region
      %2478 = dma.done [#allocation4], 64
    $region33: #{tpu_custom_call.1} parent=1 // pred_fallthru
      _
    %2479 = vsyncpa [#allocation3], 1
    %2480 = vsyncpa [#allocation6], 1
    %2481 = vsyncpa [#allocation4], 1

</llo_original>
